<compile_context>
chip_gen: v6e
topology: v6e:2x2x1
jax: 0.10.0
libtpu: 0.0.40
codegen_flags: <defaults>
</compile_context>

<pallas_src>
import functools

import jax
import jax.numpy as jnp
from jax.experimental import pallas as pl
from jax.experimental.pallas import tpu as pltpu


# ----------------------------------------------------------------------------- #
# Fused forward kernel
# ----------------------------------------------------------------------------- #
def _fused_forward_kernel(cbeta_ref, z_ref, x_ref, bbw_ref, bbb_ref,
                          nw_ref, nb_ref, *rest, plan, channels):
    """Whole Dropped_Network forward for one (batch, spatial-tile) slab.

    Every feature map is a (C, hw_tile) tile: channels on sublanes, spatial
    on lanes.  Every candidate op (modeled as a pointwise/1x1 conv) is
    relu(W^T @ f + b^T) on the MXU with f32 accumulation.
    """
    pred_w_ref, pred_b_ref, out_ref = rest[-3], rest[-2], rest[-1]
    mix_refs = rest[:-3]                      # (wcatT, bcatT) per mixed op, in plan order
    C = channels

    def mm(wT, f):
        # Weights were cast to bf16 once in the wrapper; only the activation
        # is cast here, right at the MXU boundary.  Accumulation stays f32.
        return jnp.dot(wT, f.astype(jnp.bfloat16),
                       preferred_element_type=jnp.float32)

    def backbone_neck(f):
        for li in range(bbw_ref.shape[0]):
            f = jnp.maximum(mm(bbw_ref[li], f) + bbb_ref[li], 0.0)
        return mm(nw_ref[...], f) + nb_ref[...]

    # z and x are passed as two separate row-tiled inputs (no wrapper-side
    # stack -> no extra HBM round trip).  They are run through backbone+neck
    # separately: a lane-axis concat/split at hw offsets < 128 would generate
    # exactly the cross-lane shuffle work we are trying to avoid.
    zf = backbone_neck(z_ref[0])              # (C, hw)
    xf = backbone_neck(x_ref[0])              # (C, hw)
    block_datas = [zf * xf]                   # match(): elementwise correlation

    def mixed_op(f, m_idx):
        # softmax(alpha) (and beta for head branches) is already folded into
        # wcat/bcat, so the K-way reduction is just a sum of sublane-aligned
        # (C, hw) slices of the one wide matmul result.
        K = plan["mixed"][m_idx][3]
        wcat = mix_refs[2 * m_idx][...]       # (K*C, C) bf16, scales folded in
        bcat = mix_refs[2 * m_idx + 1][...]   # (K*C, 1) f32, scales folded in
        ycat = jnp.maximum(mm(wcat, f) + bcat, 0.0)      # (K*C, hw)
        acc = ycat[0:C]
        for k in range(1, K):
            acc = acc + ycat[k * C:(k + 1) * C]
        return acc

    m_idx = 0
    num_fuse = plan["num_fuse"]
    for i in range(num_fuse + 1):
        in_blocks = plan["in_block_idx"][i]
        if i == num_fuse:
            # collector: beta-weighted sum of its inputs (betas from SMEM)
            acc = cbeta_ref[0] * block_datas[in_blocks[0]]
            for t in range(1, len(in_blocks)):
                acc = acc + cbeta_ref[t] * block_datas[in_blocks[t]]
            block_datas.append(acc)
        else:
            # HeadLayer (beta folded into each branch's wcat/bcat) + StackLayers
            acc = None
            for bi in in_blocks:
                h = mixed_op(block_datas[bi], m_idx)
                m_idx += 1
                acc = h if acc is None else acc + h
            xcur = acc
            for _ in range(plan["num_stack"][i]):
                xcur = mixed_op(xcur, m_idx)
                m_idx += 1
            block_datas.append(xcur)

    # merged, lane-dense prediction head: rows = [cls(2) | reg(4) | zero pad]
    out_ref[0] = mm(pred_w_ref[...], block_datas[-1]) + pred_b_ref[...]


# ----------------------------------------------------------------------------- #
# Synthetic NAS config (mirrors super_model.module.{input,output}_configs, etc.)
# ----------------------------------------------------------------------------- #
CFG = {
    "softmax_temp": 1.0,
    "num_ops": 3,                     # full candidate-op pool per MixedOp
    "beta_sizes": [2, 2, 1],          # per-block outgoing-edge beta vectors
    "input_configs": [
        {"in_block_idx": [0],    "beta_idx": [0],    "num_stack_layers": 1},  # fuse block 0
        {"in_block_idx": [0, 1], "beta_idx": [1, 0], "num_stack_layers": 1},  # fuse block 1
        {"in_block_idx": [1, 2], "beta_idx": [1, 0]},                         # collector
    ],
    "output_configs": [
        {"out_id": [1, 2]},   # block 0 feeds fuse0 (beta 0) and fuse1 (beta 1)
        {"out_id": [2, 3]},   # block 1 feeds fuse1 (beta 0) and collector (beta 1)
        {"out_id": [3]},      # block 2 feeds collector (beta 0)
    ],
    # kept-op indices (the "dropped" architecture)
    "alpha_head_index":  [[[0, 2]],          [[0, 1], [1, 2]]],
    "alpha_stack_index": [[[1, 2]],          [[0, 2]]],
    # [base_obj, per-fuse-block [head per-branch per-op, stack per-layer per-op],
    #  collector per-input obj, final obj]
    "sub_obj_list": [
        10.0,
        [
            [[[1.0, 2.0, 3.0]],                 [[0.5, 1.5, 2.5]]],
            [[[1.0, 2.0, 3.0], [1.1, 2.1, 3.1]], [[0.7, 1.2, 1.9]]],
        ],
        [0.3, 0.4],
        5.0,
    ],
}


def _build_plan(cfg):
    """Static traversal plan shared by the kernel and the wrapper."""
    num_fuse = len(cfg["input_configs"]) - 1
    mixed = []           # (kind, block, branch/layer, num_kept_ops, opw_offset)
    off = 0
    for i in range(num_fuse):
        in_cfg = cfg["input_configs"][i]
        for j in range(len(in_cfg["in_block_idx"])):
            K = len(cfg["alpha_head_index"][i][j])
            mixed.append(("head", i, j, K, off))
            off += K
        for j in range(len(cfg["alpha_stack_index"][i])):
            K = len(cfg["alpha_stack_index"][i][j])
            mixed.append(("stack", i, j, K, off))
            off += K
    return {
        "num_fuse": num_fuse,
        "mixed": mixed,
        "in_block_idx": [list(cfg["input_configs"][i]["in_block_idx"])
                         for i in range(num_fuse + 1)],
        "num_stack": [len(cfg["alpha_stack_index"][i]) for i in range(num_fuse)],
        "opw_len": off,
    }


def _choose_hw_tile(hw):
    # Biggest lane tile (multiple of 128, capped at 2048) dividing H*W; else
    # fall back to the full extent (always a legal minormost block).  Big
    # tiles amortize the ~0.35us/step overhead on single-TC v5e/v6e; the
    # batch grid axis still provides >=2 parallel steps for v7x megacore.
    for t in (2048, 1024, 512, 256, 128):
        if hw % t == 0:
            return t
    return hw


# ----------------------------------------------------------------------------- #
# Parameters (deterministic synthetic init)
# ----------------------------------------------------------------------------- #
def init_params(key, cfg, channels):
    keys = iter(jax.random.split(key, 512))

    def lin(cin, cout):
        w = jax.random.normal(next(keys), (cin, cout), jnp.float32) / jnp.sqrt(
            jnp.float32(cin)
        )
        b = jnp.zeros((1, cout), jnp.float32)
        return (w, b)

    params = {
        "backbone": [lin(channels, channels), lin(channels, channels)],
        "neck": lin(channels, channels),
        "prediction": {"cls": lin(channels, 2), "reg": lin(channels, 4)},
    }
    fuse, alpha_head, alpha_stack = [], [], []
    for i in range(len(cfg["input_configs"]) - 1):
        h_idx = cfg["alpha_head_index"][i]
        s_idx = cfg["alpha_stack_index"][i]
        fuse.append(
            {
                "head": [[lin(channels, channels) for _ in branch] for branch in h_idx],
                "stack": [[lin(channels, channels) for _ in layer] for layer in s_idx],
            }
        )
        alpha_head.append(
            [0.1 * jax.random.normal(next(keys), (cfg["num_ops"],), jnp.float32) for _ in h_idx]
        )
        alpha_stack.append(
            [0.1 * jax.random.normal(next(keys), (cfg["num_ops"],), jnp.float32) for _ in s_idx]
        )
    params["fuse"] = fuse
    params["alpha_head"] = alpha_head
    params["alpha_stack"] = alpha_stack
    params["beta"] = [
        0.1 * jax.random.normal(next(keys), (n,), jnp.float32) for n in cfg["beta_sizes"]
    ]
    return params


# ----------------------------------------------------------------------------- #
# Forward pass
# ----------------------------------------------------------------------------- #
def dropped_network_forward(params, cfg, z, x, bbox):
    # TODO(synk): bbox-conditioned matching of the original tracker is not modeled;
    # match() here is a plain elementwise correlation of template/search features.
    del bbox
    temp = cfg["softmax_temp"]
    plan = _build_plan(cfg)
    B, C, H, W = x.shape
    HW = H * W

    # NCHW stays NCHW: (B, C, H, W) -> (B, C, H*W) is a free reshape.  The
    # kernel consumes (C, hw) tiles directly, so there are no transpose ops
    # on either side of the pallas_call.
    z3 = z.reshape(B, C, HW)
    x3 = x.reshape(B, C, HW)

    # ---- architecture weights (tiny softmaxes) stay in JAX glue
    branch_weights = [jax.nn.softmax(bw / temp) for bw in params["beta"]]

    opw_per_mixed = []
    for (kind, i, j, K, off) in plan["mixed"]:
        if kind == "head":
            alpha = params["alpha_head"][i][j]
            kept = cfg["alpha_head_index"][i][j]
        else:
            alpha = params["alpha_stack"][i][j]
            kept = cfg["alpha_stack_index"][i][j]
        opw_per_mixed.append(jax.nn.softmax(jnp.stack([alpha[t] for t in kept]) / temp))

    # collector betas: the only arch scalars still consumed inside the kernel
    last_cfg = cfg["input_configs"][plan["num_fuse"]]
    cbeta = jnp.stack([branch_weights[bid][bpos]
                       for bid, bpos in zip(last_cfg["in_block_idx"],
                                            last_cfg["beta_idx"])])

    # ---- weights: transpose to W^T layout and cast to bf16 ONCE here (item 1)
    def wT(w):
        return jnp.transpose(w).astype(jnp.bfloat16)   # (Cout, Cin) bf16

    def bT(b):
        return jnp.transpose(b)                        # (Cout, 1) f32

    bbwT = jnp.stack([wT(w) for (w, _) in params["backbone"]])     # (L, C, C) bf16
    bbbT = jnp.stack([bT(b) for (_, b) in params["backbone"]])     # (L, C, 1) f32
    nw, nb = params["neck"]
    nwT, nbT = wT(nw), bT(nb)

    mix_args = []
    for mi, (kind, i, j, K, off) in enumerate(plan["mixed"]):
        ops = (params["fuse"][i]["head"][j] if kind == "head"
               else params["fuse"][i]["stack"][j])
        scales = opw_per_mixed[mi]
        if kind == "head":
            in_cfg = cfg["input_configs"][i]
            beta = branch_weights[in_cfg["in_block_idx"][j]][in_cfg["beta_idx"][j]]
            scales = scales * beta
        # Fold the non-negative softmax(alpha)/beta scales into the stacked
        # (K*C, C) weight and (K*C, 1) bias (exact via ReLU positive
        # homogeneity), so the kernel only sums sublane slices.
        wcatT = jnp.concatenate(
            [(jnp.transpose(w) * scales[k]).astype(jnp.bfloat16)
             for k, (w, _) in enumerate(ops)], axis=0)
        bcatT = jnp.concatenate(
            [jnp.transpose(b) * scales[k] for k, (_, b) in enumerate(ops)], axis=0)
        mix_args.append(wcatT)
        mix_args.append(bcatT)

    # merged [cls | reg] prediction head, zero-padded to a multiple of 8
    # output channels so the output tile is (8, hw): sublane-aligned and
    # lane-dense (item 4).
    wc, bc = params["prediction"]["cls"]
    wr, br = params["prediction"]["reg"]
    n_cls, n_reg = wc.shape[1], wr.shape[1]
    n_out = n_cls + n_reg
    n_out_pad = -(-n_out // 8) * 8
    predWT = jnp.concatenate(
        [jnp.transpose(wc), jnp.transpose(wr),
         jnp.zeros((n_out_pad - n_out, C), jnp.float32)], axis=0).astype(jnp.bfloat16)
    predBT = jnp.concatenate(
        [jnp.transpose(bc), jnp.transpose(br),
         jnp.zeros((n_out_pad - n_out, 1), jnp.float32)], axis=0)

    # ---- fused pallas_call: grid over (batch, spatial lane tiles)
    hw_tile = _choose_hw_tile(HW)
    grid = (B, HW // hw_tile)
    smem = pltpu.MemorySpace.SMEM

    def _rep(arr):
        # Constant-index weight blocks: DMA'd once, resident in VMEM across the
        # whole grid.  (pl.Buffered(1) could halve their buffering if channel
        # counts ever grow near the v7x 64 MiB budget; unnecessary at C=32.)
        nd = arr.ndim
        return pl.BlockSpec(arr.shape, lambda b, s, nd=nd: (0,) * nd)

    in_specs = [
        pl.BlockSpec(memory_space=smem),                          # collector betas
        pl.BlockSpec((1, C, hw_tile), lambda b, s: (b, 0, s)),    # z tile
        pl.BlockSpec((1, C, hw_tile), lambda b, s: (b, 0, s)),    # x tile
        _rep(bbwT), _rep(bbbT), _rep(nwT), _rep(nbT),
    ] + [_rep(a) for a in mix_args] + [_rep(predWT), _rep(predBT)]

    kernel = functools.partial(_fused_forward_kernel, plan=plan, channels=C)

    # rough cost hint so XLA schedules the (small) surrounding ops around us
    cols_bn = 2 * B * HW                 # z and x both traverse backbone+neck
    flops = 2 * C * C * (bbwT.shape[0] + 1) * cols_bn
    flops += sum(2 * int(w.shape[0]) * C * (B * HW) for w in mix_args[0::2])
    flops += 2 * n_out_pad * C * (B * HW)
    bytes_accessed = (int(z3.size) + int(x3.size)) * 4 + B * n_out_pad * HW * 4
    bytes_accessed += sum(int(a.size) * a.dtype.itemsize
                          for a in [bbwT, bbbT, nwT, nbT, predWT, predBT] + mix_args)

    out3 = pl.pallas_call(
        kernel,
        out_shape=jax.ShapeDtypeStruct((B, n_out_pad, HW), jnp.float32),
        grid=grid,
        in_specs=in_specs,
        out_specs=pl.BlockSpec((1, n_out_pad, hw_tile), lambda b, s: (b, 0, s)),
        compiler_params=pltpu.CompilerParams(
            dimension_semantics=("parallel", "parallel"),   # shard over v7x's 2 TCs
            vmem_limit_bytes=32 * 1024 * 1024,              # safe on v5e/v6e/v7x
        ),
        cost_estimate=pl.CostEstimate(flops=int(flops), transcendentals=0,
                                      bytes_accessed=int(bytes_accessed)),
    )(cbeta, z3, x3, bbwT, bbbT, nwT, nbT, *mix_args, predWT, predBT)

    # output is already channels-first: only free reshapes + tiny slices here
    cls = out3[:, :n_cls, :].reshape(B, n_cls, H, W)
    reg = out3[:, n_cls:n_out, :].reshape(B, n_reg, H, W)

    # ---- scalar sub_obj bookkeeping (pure scalar math, stays in JAX glue)
    sub_obj_list = [[[], jnp.float32(cfg["sub_obj_list"][0])]]
    m_idx = 0
    for i in range(plan["num_fuse"] + 1):
        in_cfg = cfg["input_configs"][i]
        if i == plan["num_fuse"]:
            sub_obj_list.append([[jnp.float32(v) for v in cfg["sub_obj_list"][2]],
                                 jnp.float32(0.0)])
        else:
            block_cfg = cfg["sub_obj_list"][1][i]
            head_sub = []
            for j in range(len(in_cfg["in_block_idx"])):
                kept = cfg["alpha_head_index"][i][j]
                w = opw_per_mixed[m_idx]; m_idx += 1
                head_sub.append(sum(w[t] * block_cfg[0][j][bi] for t, bi in enumerate(kept)))
            stack_sub = jnp.float32(0.0)
            for j in range(len(cfg["alpha_stack_index"][i])):
                kept = cfg["alpha_stack_index"][i][j]
                w = opw_per_mixed[m_idx]; m_idx += 1
                stack_sub = stack_sub + sum(w[t] * block_cfg[1][j][bi]
                                            for t, bi in enumerate(kept))
            sub_obj_list.append([head_sub, stack_sub])

    # back-to-front sub_obj accumulation, exactly as the reference forward
    out_cfgs = cfg["output_configs"]
    for i, out_config in enumerate(out_cfgs[::-1]):
        block_id = len(out_cfgs) - i - 1
        sum_obj = []
        for j, out_id in enumerate(out_config["out_id"]):
            head_id = cfg["input_configs"][out_id - 1]["in_block_idx"].index(block_id)
            head_obj = sub_obj_list[out_id][0][head_id]
            stack_obj = sub_obj_list[out_id][1]
            sum_obj.append(branch_weights[block_id][j] * (head_obj + stack_obj))
        sub_obj_list[-i - 2][1] = sub_obj_list[-i - 2][1] + sum(sum_obj)

    net_sub_obj = jnp.float32(cfg["sub_obj_list"][-1]) + sub_obj_list[0][1]
    return cls, reg, jnp.reshape(net_sub_obj, (1,))


# ----------------------------------------------------------------------------- #
# Driver
# ----------------------------------------------------------------------------- #
if __name__ == "__main__":
    key = jax.random.PRNGKey(0)
    kz, kx, kb = jax.random.split(key, 3)

    B, C, H, W = 2, 32, 8, 8            # NCHW, as in PyTorch
    z = jax.random.normal(kz, (B, C, H, W), jnp.float32)     # template crop
    x = jax.random.normal(kx, (B, C, H, W), jnp.float32)     # search crop
    bbox = jax.random.uniform(kb, (B, 4), jnp.float32)

    params = init_params(jax.random.PRNGKey(42), CFG, C)

    fwd = jax.jit(lambda p, z_, x_, bb: dropped_network_forward(p, CFG, z_, x_, bb))
    cls, reg, net_sub_obj = fwd(params, z, x, bbox)
    jax.block_until_ready((cls, reg, net_sub_obj))

    assert cls.shape == (B, 2, H, W)
    assert reg.shape == (B, 4, H, W)
    assert net_sub_obj.shape == (1,)
    print("KERNEL_OK")
</pallas_src>

<mosaic_0001>
module attributes {stable_mosaic.version = 11 : i64} {
  func.func @_fused_forward_kernel(%arg0: i32, %arg1: i32, %arg2: memref<2xf32, #tpu.memory_space<smem>>, %arg3: memref<1x32x64xf32, #tpu.memory_space<vmem>>, %arg4: memref<1x32x64xf32, #tpu.memory_space<vmem>>, %arg5: memref<2x32x32xbf16, #tpu.memory_space<vmem>>, %arg6: memref<2x32x1xf32, #tpu.memory_space<vmem>>, %arg7: memref<32x32xbf16, #tpu.memory_space<vmem>>, %arg8: memref<32x1xf32, #tpu.memory_space<vmem>>, %arg9: memref<64x32xbf16, #tpu.memory_space<vmem>>, %arg10: memref<64x1xf32, #tpu.memory_space<vmem>>, %arg11: memref<64x32xbf16, #tpu.memory_space<vmem>>, %arg12: memref<64x1xf32, #tpu.memory_space<vmem>>, %arg13: memref<64x32xbf16, #tpu.memory_space<vmem>>, %arg14: memref<64x1xf32, #tpu.memory_space<vmem>>, %arg15: memref<64x32xbf16, #tpu.memory_space<vmem>>, %arg16: memref<64x1xf32, #tpu.memory_space<vmem>>, %arg17: memref<64x32xbf16, #tpu.memory_space<vmem>>, %arg18: memref<64x1xf32, #tpu.memory_space<vmem>>, %arg19: memref<8x32xbf16, #tpu.memory_space<vmem>>, %arg20: memref<8x1xf32, #tpu.memory_space<vmem>>, %arg21: memref<1x8x64xf32, #tpu.memory_space<vmem>>) attributes {dimension_semantics = [#tpu.dimension_semantics<parallel>, #tpu.dimension_semantics<parallel>], iteration_bounds = array<i64: 2, 1>, scalar_prefetch = 0 : i64, scratch_operands = 0 : i64, tpu.core_type = #tpu.core_type<tc>, window_params = [{transform_indices = @transform_0, window_bounds = array<i64: 2>}, {transform_indices = @transform_1, window_bounds = array<i64: 1, 32, 64>}, {transform_indices = @transform_2, window_bounds = array<i64: 1, 32, 64>}, {pipeline_mode = #tpu.pipeline_mode<synchronous>, transform_indices = @transform_3, window_bounds = array<i64: 2, 32, 32>}, {pipeline_mode = #tpu.pipeline_mode<synchronous>, transform_indices = @transform_4, window_bounds = array<i64: 2, 32, 1>}, {pipeline_mode = #tpu.pipeline_mode<synchronous>, transform_indices = @transform_5, window_bounds = array<i64: 32, 32>}, {pipeline_mode = #tpu.pipeline_mode<synchronous>, transform_indices = @transform_6, window_bounds = array<i64: 32, 1>}, {pipeline_mode = #tpu.pipeline_mode<synchronous>, transform_indices = @transform_7, window_bounds = array<i64: 64, 32>}, {pipeline_mode = #tpu.pipeline_mode<synchronous>, transform_indices = @transform_8, window_bounds = array<i64: 64, 1>}, {pipeline_mode = #tpu.pipeline_mode<synchronous>, transform_indices = @transform_9, window_bounds = array<i64: 64, 32>}, {pipeline_mode = #tpu.pipeline_mode<synchronous>, transform_indices = @transform_10, window_bounds = array<i64: 64, 1>}, {pipeline_mode = #tpu.pipeline_mode<synchronous>, transform_indices = @transform_11, window_bounds = array<i64: 64, 32>}, {pipeline_mode = #tpu.pipeline_mode<synchronous>, transform_indices = @transform_12, window_bounds = array<i64: 64, 1>}, {pipeline_mode = #tpu.pipeline_mode<synchronous>, transform_indices = @transform_13, window_bounds = array<i64: 64, 32>}, {pipeline_mode = #tpu.pipeline_mode<synchronous>, transform_indices = @transform_14, window_bounds = array<i64: 64, 1>}, {pipeline_mode = #tpu.pipeline_mode<synchronous>, transform_indices = @transform_15, window_bounds = array<i64: 64, 32>}, {pipeline_mode = #tpu.pipeline_mode<synchronous>, transform_indices = @transform_16, window_bounds = array<i64: 64, 1>}, {pipeline_mode = #tpu.pipeline_mode<synchronous>, transform_indices = @transform_17, window_bounds = array<i64: 8, 32>}, {pipeline_mode = #tpu.pipeline_mode<synchronous>, transform_indices = @transform_18, window_bounds = array<i64: 8, 1>}, {transform_indices = @transform_19, window_bounds = array<i64: 1, 8, 64>}]} {
    %c0 = arith.constant 0 : index
    %c0_0 = arith.constant 0 : index
    %c0_1 = arith.constant 0 : index
    %0 = vector.load %arg3[%c0, %c0_0, %c0_1] : memref<1x32x64xf32, #tpu.memory_space<vmem>>, vector<1x32x64xf32>
    %1 = vector.shape_cast %0 : vector<1x32x64xf32> to vector<32x64xf32>
    %c0_2 = arith.constant 0 : index
    %c0_3 = arith.constant 0 : index
    %c0_4 = arith.constant 0 : index
    %2 = vector.load %arg5[%c0_2, %c0_3, %c0_4] : memref<2x32x32xbf16, #tpu.memory_space<vmem>>, vector<1x32x32xbf16>
    %3 = vector.shape_cast %2 : vector<1x32x32xbf16> to vector<32x32xbf16>
    %4 = arith.truncf %1 : vector<32x64xf32> to vector<32x64xbf16>
    %cst = arith.constant dense<0.000000e+00> : vector<32x64xf32>
    %5 = tpu.matmul %3, %4, %cst {dimension_numbers = #tpu.dot_dimension_numbers<[1], [0], [0], [1], [0, 0, 1, 1], [], []>} : vector<32x32xbf16>, vector<32x64xbf16>, vector<32x64xf32> -> vector<32x64xf32>
    %c0_5 = arith.constant 0 : index
    %c0_6 = arith.constant 0 : index
    %c0_7 = arith.constant 0 : index
    %6 = vector.load %arg6[%c0_5, %c0_6, %c0_7] : memref<2x32x1xf32, #tpu.memory_space<vmem>>, vector<1x32x1xf32>
    %7 = vector.shape_cast %6 : vector<1x32x1xf32> to vector<32x1xf32>
    %8 = vector.broadcast %7 : vector<32x1xf32> to vector<32x64xf32>
    %9 = arith.addf %5, %8 : vector<32x64xf32>
    %cst_8 = arith.constant 0.000000e+00 : f32
    %10 = vector.broadcast %cst_8 : f32 to vector<32x64xf32>
    %11 = arith.maximumf %9, %10 : vector<32x64xf32>
    %c1 = arith.constant 1 : index
    %c0_9 = arith.constant 0 : index
    %c0_10 = arith.constant 0 : index
    %12 = vector.load %arg5[%c1, %c0_9, %c0_10] : memref<2x32x32xbf16, #tpu.memory_space<vmem>>, vector<1x32x32xbf16>
    %13 = vector.shape_cast %12 : vector<1x32x32xbf16> to vector<32x32xbf16>
    %14 = arith.truncf %11 : vector<32x64xf32> to vector<32x64xbf16>
    %cst_11 = arith.constant dense<0.000000e+00> : vector<32x64xf32>
    %15 = tpu.matmul %13, %14, %cst_11 {dimension_numbers = #tpu.dot_dimension_numbers<[1], [0], [0], [1], [0, 0, 1, 1], [], []>} : vector<32x32xbf16>, vector<32x64xbf16>, vector<32x64xf32> -> vector<32x64xf32>
    %c1_12 = arith.constant 1 : index
    %c0_13 = arith.constant 0 : index
    %c0_14 = arith.constant 0 : index
    %16 = vector.load %arg6[%c1_12, %c0_13, %c0_14] : memref<2x32x1xf32, #tpu.memory_space<vmem>>, vector<1x32x1xf32>
    %17 = vector.shape_cast %16 : vector<1x32x1xf32> to vector<32x1xf32>
    %18 = vector.broadcast %17 : vector<32x1xf32> to vector<32x64xf32>
    %19 = arith.addf %15, %18 : vector<32x64xf32>
    %cst_15 = arith.constant 0.000000e+00 : f32
    %20 = vector.broadcast %cst_15 : f32 to vector<32x64xf32>
    %21 = arith.maximumf %19, %20 : vector<32x64xf32>
    %c0_16 = arith.constant 0 : index
    %c0_17 = arith.constant 0 : index
    %22 = vector.load %arg7[%c0_16, %c0_17] : memref<32x32xbf16, #tpu.memory_space<vmem>>, vector<32x32xbf16>
    %23 = arith.truncf %21 : vector<32x64xf32> to vector<32x64xbf16>
    %cst_18 = arith.constant dense<0.000000e+00> : vector<32x64xf32>
    %24 = tpu.matmul %22, %23, %cst_18 {dimension_numbers = #tpu.dot_dimension_numbers<[1], [0], [0], [1], [0, 0, 1, 1], [], []>} : vector<32x32xbf16>, vector<32x64xbf16>, vector<32x64xf32> -> vector<32x64xf32>
    %c0_19 = arith.constant 0 : index
    %c0_20 = arith.constant 0 : index
    %25 = vector.load %arg8[%c0_19, %c0_20] : memref<32x1xf32, #tpu.memory_space<vmem>>, vector<32x1xf32>
    %26 = vector.broadcast %25 : vector<32x1xf32> to vector<32x64xf32>
    %27 = arith.addf %24, %26 : vector<32x64xf32>
    %c0_21 = arith.constant 0 : index
    %c0_22 = arith.constant 0 : index
    %c0_23 = arith.constant 0 : index
    %28 = vector.load %arg4[%c0_21, %c0_22, %c0_23] : memref<1x32x64xf32, #tpu.memory_space<vmem>>, vector<1x32x64xf32>
    %29 = vector.shape_cast %28 : vector<1x32x64xf32> to vector<32x64xf32>
    %c0_24 = arith.constant 0 : index
    %c0_25 = arith.constant 0 : index
    %c0_26 = arith.constant 0 : index
    %30 = vector.load %arg5[%c0_24, %c0_25, %c0_26] : memref<2x32x32xbf16, #tpu.memory_space<vmem>>, vector<1x32x32xbf16>
    %31 = vector.shape_cast %30 : vector<1x32x32xbf16> to vector<32x32xbf16>
    %32 = arith.truncf %29 : vector<32x64xf32> to vector<32x64xbf16>
    %cst_27 = arith.constant dense<0.000000e+00> : vector<32x64xf32>
    %33 = tpu.matmul %31, %32, %cst_27 {dimension_numbers = #tpu.dot_dimension_numbers<[1], [0], [0], [1], [0, 0, 1, 1], [], []>} : vector<32x32xbf16>, vector<32x64xbf16>, vector<32x64xf32> -> vector<32x64xf32>
    %c0_28 = arith.constant 0 : index
    %c0_29 = arith.constant 0 : index
    %c0_30 = arith.constant 0 : index
    %34 = vector.load %arg6[%c0_28, %c0_29, %c0_30] : memref<2x32x1xf32, #tpu.memory_space<vmem>>, vector<1x32x1xf32>
    %35 = vector.shape_cast %34 : vector<1x32x1xf32> to vector<32x1xf32>
    %36 = vector.broadcast %35 : vector<32x1xf32> to vector<32x64xf32>
    %37 = arith.addf %33, %36 : vector<32x64xf32>
    %cst_31 = arith.constant 0.000000e+00 : f32
    %38 = vector.broadcast %cst_31 : f32 to vector<32x64xf32>
    %39 = arith.maximumf %37, %38 : vector<32x64xf32>
    %c1_32 = arith.constant 1 : index
    %c0_33 = arith.constant 0 : index
    %c0_34 = arith.constant 0 : index
    %40 = vector.load %arg5[%c1_32, %c0_33, %c0_34] : memref<2x32x32xbf16, #tpu.memory_space<vmem>>, vector<1x32x32xbf16>
    %41 = vector.shape_cast %40 : vector<1x32x32xbf16> to vector<32x32xbf16>
    %42 = arith.truncf %39 : vector<32x64xf32> to vector<32x64xbf16>
    %cst_35 = arith.constant dense<0.000000e+00> : vector<32x64xf32>
    %43 = tpu.matmul %41, %42, %cst_35 {dimension_numbers = #tpu.dot_dimension_numbers<[1], [0], [0], [1], [0, 0, 1, 1], [], []>} : vector<32x32xbf16>, vector<32x64xbf16>, vector<32x64xf32> -> vector<32x64xf32>
    %c1_36 = arith.constant 1 : index
    %c0_37 = arith.constant 0 : index
    %c0_38 = arith.constant 0 : index
    %44 = vector.load %arg6[%c1_36, %c0_37, %c0_38] : memref<2x32x1xf32, #tpu.memory_space<vmem>>, vector<1x32x1xf32>
    %45 = vector.shape_cast %44 : vector<1x32x1xf32> to vector<32x1xf32>
    %46 = vector.broadcast %45 : vector<32x1xf32> to vector<32x64xf32>
    %47 = arith.addf %43, %46 : vector<32x64xf32>
    %cst_39 = arith.constant 0.000000e+00 : f32
    %48 = vector.broadcast %cst_39 : f32 to vector<32x64xf32>
    %49 = arith.maximumf %47, %48 : vector<32x64xf32>
    %c0_40 = arith.constant 0 : index
    %c0_41 = arith.constant 0 : index
    %50 = vector.load %arg7[%c0_40, %c0_41] : memref<32x32xbf16, #tpu.memory_space<vmem>>, vector<32x32xbf16>
    %51 = arith.truncf %49 : vector<32x64xf32> to vector<32x64xbf16>
    %cst_42 = arith.constant dense<0.000000e+00> : vector<32x64xf32>
    %52 = tpu.matmul %50, %51, %cst_42 {dimension_numbers = #tpu.dot_dimension_numbers<[1], [0], [0], [1], [0, 0, 1, 1], [], []>} : vector<32x32xbf16>, vector<32x64xbf16>, vector<32x64xf32> -> vector<32x64xf32>
    %c0_43 = arith.constant 0 : index
    %c0_44 = arith.constant 0 : index
    %53 = vector.load %arg8[%c0_43, %c0_44] : memref<32x1xf32, #tpu.memory_space<vmem>>, vector<32x1xf32>
    %54 = vector.broadcast %53 : vector<32x1xf32> to vector<32x64xf32>
    %55 = arith.addf %52, %54 : vector<32x64xf32>
    %56 = arith.mulf %27, %55 : vector<32x64xf32>
    %c0_45 = arith.constant 0 : index
    %c0_46 = arith.constant 0 : index
    %57 = vector.load %arg9[%c0_45, %c0_46] : memref<64x32xbf16, #tpu.memory_space<vmem>>, vector<64x32xbf16>
    %c0_47 = arith.constant 0 : index
    %c0_48 = arith.constant 0 : index
    %58 = vector.load %arg10[%c0_47, %c0_48] : memref<64x1xf32, #tpu.memory_space<vmem>>, vector<64x1xf32>
    %59 = arith.truncf %56 : vector<32x64xf32> to vector<32x64xbf16>
    %cst_49 = arith.constant dense<0.000000e+00> : vector<64x64xf32>
    %60 = tpu.matmul %57, %59, %cst_49 {dimension_numbers = #tpu.dot_dimension_numbers<[1], [0], [0], [1], [0, 0, 1, 1], [], []>} : vector<64x32xbf16>, vector<32x64xbf16>, vector<64x64xf32> -> vector<64x64xf32>
    %61 = vector.broadcast %58 : vector<64x1xf32> to vector<64x64xf32>
    %62 = arith.addf %60, %61 : vector<64x64xf32>
    %cst_50 = arith.constant 0.000000e+00 : f32
    %63 = vector.broadcast %cst_50 : f32 to vector<64x64xf32>
    %64 = arith.maximumf %62, %63 : vector<64x64xf32>
    %65 = vector.extract_strided_slice %64 {offsets = [0, 0], sizes = [32, 64], strides = [1, 1]} : vector<64x64xf32> to vector<32x64xf32>
    %66 = vector.extract_strided_slice %64 {offsets = [32, 0], sizes = [32, 64], strides = [1, 1]} : vector<64x64xf32> to vector<32x64xf32>
    %67 = arith.addf %65, %66 : vector<32x64xf32>
    %c0_51 = arith.constant 0 : index
    %c0_52 = arith.constant 0 : index
    %68 = vector.load %arg11[%c0_51, %c0_52] : memref<64x32xbf16, #tpu.memory_space<vmem>>, vector<64x32xbf16>
    %c0_53 = arith.constant 0 : index
    %c0_54 = arith.constant 0 : index
    %69 = vector.load %arg12[%c0_53, %c0_54] : memref<64x1xf32, #tpu.memory_space<vmem>>, vector<64x1xf32>
    %70 = arith.truncf %67 : vector<32x64xf32> to vector<32x64xbf16>
    %cst_55 = arith.constant dense<0.000000e+00> : vector<64x64xf32>
    %71 = tpu.matmul %68, %70, %cst_55 {dimension_numbers = #tpu.dot_dimension_numbers<[1], [0], [0], [1], [0, 0, 1, 1], [], []>} : vector<64x32xbf16>, vector<32x64xbf16>, vector<64x64xf32> -> vector<64x64xf32>
    %72 = vector.broadcast %69 : vector<64x1xf32> to vector<64x64xf32>
    %73 = arith.addf %71, %72 : vector<64x64xf32>
    %cst_56 = arith.constant 0.000000e+00 : f32
    %74 = vector.broadcast %cst_56 : f32 to vector<64x64xf32>
    %75 = arith.maximumf %73, %74 : vector<64x64xf32>
    %76 = vector.extract_strided_slice %75 {offsets = [0, 0], sizes = [32, 64], strides = [1, 1]} : vector<64x64xf32> to vector<32x64xf32>
    %77 = vector.extract_strided_slice %75 {offsets = [32, 0], sizes = [32, 64], strides = [1, 1]} : vector<64x64xf32> to vector<32x64xf32>
    %78 = arith.addf %76, %77 : vector<32x64xf32>
    %c0_57 = arith.constant 0 : index
    %c0_58 = arith.constant 0 : index
    %79 = vector.load %arg13[%c0_57, %c0_58] : memref<64x32xbf16, #tpu.memory_space<vmem>>, vector<64x32xbf16>
    %c0_59 = arith.constant 0 : index
    %c0_60 = arith.constant 0 : index
    %80 = vector.load %arg14[%c0_59, %c0_60] : memref<64x1xf32, #tpu.memory_space<vmem>>, vector<64x1xf32>
    %81 = arith.truncf %56 : vector<32x64xf32> to vector<32x64xbf16>
    %cst_61 = arith.constant dense<0.000000e+00> : vector<64x64xf32>
    %82 = tpu.matmul %79, %81, %cst_61 {dimension_numbers = #tpu.dot_dimension_numbers<[1], [0], [0], [1], [0, 0, 1, 1], [], []>} : vector<64x32xbf16>, vector<32x64xbf16>, vector<64x64xf32> -> vector<64x64xf32>
    %83 = vector.broadcast %80 : vector<64x1xf32> to vector<64x64xf32>
    %84 = arith.addf %82, %83 : vector<64x64xf32>
    %cst_62 = arith.constant 0.000000e+00 : f32
    %85 = vector.broadcast %cst_62 : f32 to vector<64x64xf32>
    %86 = arith.maximumf %84, %85 : vector<64x64xf32>
    %87 = vector.extract_strided_slice %86 {offsets = [0, 0], sizes = [32, 64], strides = [1, 1]} : vector<64x64xf32> to vector<32x64xf32>
    %88 = vector.extract_strided_slice %86 {offsets = [32, 0], sizes = [32, 64], strides = [1, 1]} : vector<64x64xf32> to vector<32x64xf32>
    %89 = arith.addf %87, %88 : vector<32x64xf32>
    %c0_63 = arith.constant 0 : index
    %c0_64 = arith.constant 0 : index
    %90 = vector.load %arg15[%c0_63, %c0_64] : memref<64x32xbf16, #tpu.memory_space<vmem>>, vector<64x32xbf16>
    %c0_65 = arith.constant 0 : index
    %c0_66 = arith.constant 0 : index
    %91 = vector.load %arg16[%c0_65, %c0_66] : memref<64x1xf32, #tpu.memory_space<vmem>>, vector<64x1xf32>
    %92 = arith.truncf %78 : vector<32x64xf32> to vector<32x64xbf16>
    %cst_67 = arith.constant dense<0.000000e+00> : vector<64x64xf32>
    %93 = tpu.matmul %90, %92, %cst_67 {dimension_numbers = #tpu.dot_dimension_numbers<[1], [0], [0], [1], [0, 0, 1, 1], [], []>} : vector<64x32xbf16>, vector<32x64xbf16>, vector<64x64xf32> -> vector<64x64xf32>
    %94 = vector.broadcast %91 : vector<64x1xf32> to vector<64x64xf32>
    %95 = arith.addf %93, %94 : vector<64x64xf32>
    %cst_68 = arith.constant 0.000000e+00 : f32
    %96 = vector.broadcast %cst_68 : f32 to vector<64x64xf32>
    %97 = arith.maximumf %95, %96 : vector<64x64xf32>
    %98 = vector.extract_strided_slice %97 {offsets = [0, 0], sizes = [32, 64], strides = [1, 1]} : vector<64x64xf32> to vector<32x64xf32>
    %99 = vector.extract_strided_slice %97 {offsets = [32, 0], sizes = [32, 64], strides = [1, 1]} : vector<64x64xf32> to vector<32x64xf32>
    %100 = arith.addf %98, %99 : vector<32x64xf32>
    %101 = arith.addf %89, %100 : vector<32x64xf32>
    %c0_69 = arith.constant 0 : index
    %c0_70 = arith.constant 0 : index
    %102 = vector.load %arg17[%c0_69, %c0_70] : memref<64x32xbf16, #tpu.memory_space<vmem>>, vector<64x32xbf16>
    %c0_71 = arith.constant 0 : index
    %c0_72 = arith.constant 0 : index
    %103 = vector.load %arg18[%c0_71, %c0_72] : memref<64x1xf32, #tpu.memory_space<vmem>>, vector<64x1xf32>
    %104 = arith.truncf %101 : vector<32x64xf32> to vector<32x64xbf16>
    %cst_73 = arith.constant dense<0.000000e+00> : vector<64x64xf32>
    %105 = tpu.matmul %102, %104, %cst_73 {dimension_numbers = #tpu.dot_dimension_numbers<[1], [0], [0], [1], [0, 0, 1, 1], [], []>} : vector<64x32xbf16>, vector<32x64xbf16>, vector<64x64xf32> -> vector<64x64xf32>
    %106 = vector.broadcast %103 : vector<64x1xf32> to vector<64x64xf32>
    %107 = arith.addf %105, %106 : vector<64x64xf32>
    %cst_74 = arith.constant 0.000000e+00 : f32
    %108 = vector.broadcast %cst_74 : f32 to vector<64x64xf32>
    %109 = arith.maximumf %107, %108 : vector<64x64xf32>
    %110 = vector.extract_strided_slice %109 {offsets = [0, 0], sizes = [32, 64], strides = [1, 1]} : vector<64x64xf32> to vector<32x64xf32>
    %111 = vector.extract_strided_slice %109 {offsets = [32, 0], sizes = [32, 64], strides = [1, 1]} : vector<64x64xf32> to vector<32x64xf32>
    %112 = arith.addf %110, %111 : vector<32x64xf32>
    %c0_75 = arith.constant 0 : index
    %113 = memref.load %arg2[%c0_75] : memref<2xf32, #tpu.memory_space<smem>>
    %114 = vector.broadcast %113 : f32 to vector<32x64xf32>
    %115 = arith.mulf %114, %78 : vector<32x64xf32>
    %c1_76 = arith.constant 1 : index
    %116 = memref.load %arg2[%c1_76] : memref<2xf32, #tpu.memory_space<smem>>
    %117 = vector.broadcast %116 : f32 to vector<32x64xf32>
    %118 = arith.mulf %117, %112 : vector<32x64xf32>
    %119 = arith.addf %115, %118 : vector<32x64xf32>
    %c0_77 = arith.constant 0 : index
    %c0_78 = arith.constant 0 : index
    %120 = vector.load %arg19[%c0_77, %c0_78] : memref<8x32xbf16, #tpu.memory_space<vmem>>, vector<8x32xbf16>
    %121 = arith.truncf %119 : vector<32x64xf32> to vector<32x64xbf16>
    %cst_79 = arith.constant dense<0.000000e+00> : vector<8x64xf32>
    %122 = tpu.matmul %120, %121, %cst_79 {dimension_numbers = #tpu.dot_dimension_numbers<[1], [0], [0], [1], [0, 0, 1, 1], [], []>} : vector<8x32xbf16>, vector<32x64xbf16>, vector<8x64xf32> -> vector<8x64xf32>
    %c0_80 = arith.constant 0 : index
    %c0_81 = arith.constant 0 : index
    %123 = vector.load %arg20[%c0_80, %c0_81] : memref<8x1xf32, #tpu.memory_space<vmem>>, vector<8x1xf32>
    %124 = vector.broadcast %123 : vector<8x1xf32> to vector<8x64xf32>
    %125 = arith.addf %122, %124 : vector<8x64xf32>
    %c0_82 = arith.constant 0 : index
    %c0_83 = arith.constant 0 : index
    %c0_84 = arith.constant 0 : index
    %126 = vector.load %arg21[%c0_82, %c0_83, %c0_84] : memref<1x8x64xf32, #tpu.memory_space<vmem>>, vector<1x8x64xf32>
    %127 = vector.shape_cast %126 : vector<1x8x64xf32> to vector<8x64xf32>
    %128 = vector.shape_cast %125 : vector<8x64xf32> to vector<1x8x64xf32>
    tpu.vector_store %arg21[%c0_82, %c0_83, %c0_84], %128 {strides = array<i32>} : memref<1x8x64xf32, #tpu.memory_space<vmem>>, vector<1x8x64xf32>,
    return
  }
  func.func @transform_0(%arg0: i32, %arg1: i32) -> i32 {
    %c0_i32 = arith.constant 0 : i32
    %c0_i32_0 = arith.constant 0 : i32
    return %c0_i32 : i32
  }
  func.func @transform_1(%arg0: i32, %arg1: i32) -> (i32, i32, i32) {
    %c0_i32 = arith.constant 0 : i32
    %c0_i32_0 = arith.constant 0 : i32
    return %arg0, %c0_i32, %arg1 : i32, i32, i32
  }
  func.func @transform_2(%arg0: i32, %arg1: i32) -> (i32, i32, i32) {
    %c0_i32 = arith.constant 0 : i32
    %c0_i32_0 = arith.constant 0 : i32
    return %arg0, %c0_i32, %arg1 : i32, i32, i32
  }
  func.func @transform_3(%arg0: i32, %arg1: i32) -> (i32, i32, i32) {
    %c0_i32 = arith.constant 0 : i32
    %c0_i32_0 = arith.constant 0 : i32
    %c0_i32_1 = arith.constant 0 : i32
    %c0_i32_2 = arith.constant 0 : i32
    return %c0_i32, %c0_i32_0, %c0_i32_1 : i32, i32, i32
  }
  func.func @transform_4(%arg0: i32, %arg1: i32) -> (i32, i32, i32) {
    %c0_i32 = arith.constant 0 : i32
    %c0_i32_0 = arith.constant 0 : i32
    %c0_i32_1 = arith.constant 0 : i32
    %c0_i32_2 = arith.constant 0 : i32
    return %c0_i32, %c0_i32_0, %c0_i32_1 : i32, i32, i32
  }
  func.func @transform_5(%arg0: i32, %arg1: i32) -> (i32, i32) {
    %c0_i32 = arith.constant 0 : i32
    %c0_i32_0 = arith.constant 0 : i32
    %c0_i32_1 = arith.constant 0 : i32
    return %c0_i32, %c0_i32_0 : i32, i32
  }
  func.func @transform_6(%arg0: i32, %arg1: i32) -> (i32, i32) {
    %c0_i32 = arith.constant 0 : i32
    %c0_i32_0 = arith.constant 0 : i32
    %c0_i32_1 = arith.constant 0 : i32
    return %c0_i32, %c0_i32_0 : i32, i32
  }
  func.func @transform_7(%arg0: i32, %arg1: i32) -> (i32, i32) {
    %c0_i32 = arith.constant 0 : i32
    %c0_i32_0 = arith.constant 0 : i32
    %c0_i32_1 = arith.constant 0 : i32
    return %c0_i32, %c0_i32_0 : i32, i32
  }
  func.func @transform_8(%arg0: i32, %arg1: i32) -> (i32, i32) {
    %c0_i32 = arith.constant 0 : i32
    %c0_i32_0 = arith.constant 0 : i32
    %c0_i32_1 = arith.constant 0 : i32
    return %c0_i32, %c0_i32_0 : i32, i32
  }
  func.func @transform_9(%arg0: i32, %arg1: i32) -> (i32, i32) {
    %c0_i32 = arith.constant 0 : i32
    %c0_i32_0 = arith.constant 0 : i32
    %c0_i32_1 = arith.constant 0 : i32
    return %c0_i32, %c0_i32_0 : i32, i32
  }
  func.func @transform_10(%arg0: i32, %arg1: i32) -> (i32, i32) {
    %c0_i32 = arith.constant 0 : i32
    %c0_i32_0 = arith.constant 0 : i32
    %c0_i32_1 = arith.constant 0 : i32
    return %c0_i32, %c0_i32_0 : i32, i32
  }
  func.func @transform_11(%arg0: i32, %arg1: i32) -> (i32, i32) {
    %c0_i32 = arith.constant 0 : i32
    %c0_i32_0 = arith.constant 0 : i32
    %c0_i32_1 = arith.constant 0 : i32
    return %c0_i32, %c0_i32_0 : i32, i32
  }
  func.func @transform_12(%arg0: i32, %arg1: i32) -> (i32, i32) {
    %c0_i32 = arith.constant 0 : i32
    %c0_i32_0 = arith.constant 0 : i32
    %c0_i32_1 = arith.constant 0 : i32
    return %c0_i32, %c0_i32_0 : i32, i32
  }
  func.func @transform_13(%arg0: i32, %arg1: i32) -> (i32, i32) {
    %c0_i32 = arith.constant 0 : i32
    %c0_i32_0 = arith.constant 0 : i32
    %c0_i32_1 = arith.constant 0 : i32
    return %c0_i32, %c0_i32_0 : i32, i32
  }
  func.func @transform_14(%arg0: i32, %arg1: i32) -> (i32, i32) {
    %c0_i32 = arith.constant 0 : i32
    %c0_i32_0 = arith.constant 0 : i32
    %c0_i32_1 = arith.constant 0 : i32
    return %c0_i32, %c0_i32_0 : i32, i32
  }
  func.func @transform_15(%arg0: i32, %arg1: i32) -> (i32, i32) {
    %c0_i32 = arith.constant 0 : i32
    %c0_i32_0 = arith.constant 0 : i32
    %c0_i32_1 = arith.constant 0 : i32
    return %c0_i32, %c0_i32_0 : i32, i32
  }
  func.func @transform_16(%arg0: i32, %arg1: i32) -> (i32, i32) {
    %c0_i32 = arith.constant 0 : i32
    %c0_i32_0 = arith.constant 0 : i32
    %c0_i32_1 = arith.constant 0 : i32
    return %c0_i32, %c0_i32_0 : i32, i32
  }
  func.func @transform_17(%arg0: i32, %arg1: i32) -> (i32, i32) {
    %c0_i32 = arith.constant 0 : i32
    %c0_i32_0 = arith.constant 0 : i32
    %c0_i32_1 = arith.constant 0 : i32
    return %c0_i32, %c0_i32_0 : i32, i32
  }
  func.func @transform_18(%arg0: i32, %arg1: i32) -> (i32, i32) {
    %c0_i32 = arith.constant 0 : i32
    %c0_i32_0 = arith.constant 0 : i32
    %c0_i32_1 = arith.constant 0 : i32
    return %c0_i32, %c0_i32_0 : i32, i32
  }
  func.func @transform_19(%arg0: i32, %arg1: i32) -> (i32, i32, i32) {
    %c0_i32 = arith.constant 0 : i32
    %c0_i32_0 = arith.constant 0 : i32
    return %arg0, %c0_i32, %arg1 : i32, i32, i32
  }
}

</mosaic_0001>

<llo_original>
// kernel: _lambda_.1
$region0: #{_lambda_.1}
  #allocation0 [shape = 'u32[]', space=smem, size = 0x4, offset = 0x4, fixed_abs, tag = 'smem constant byte address 0x4 - core index']
  #allocation1 [shape = 'u32[144,128]{1,0:T(1,128)}', space=vmem, size = 0x12000, scoped, tag = 'internal scratch']
  %s0 = inlined_call_operand.vmem [shape: f32[2], index: 0, kind: input, shape index: {}]
  %s1 = inlined_call_operand.vmem [shape: f32[2,32,64], index: 1, kind: input, shape index: {}]
  %s2 = inlined_call_operand.vmem [shape: f32[2,32,64], index: 2, kind: input, shape index: {}]
  %s3 = inlined_call_operand.vmem [shape: bf16[2,32,32], index: 3, kind: input, shape index: {}]
  %s4 = inlined_call_operand.vmem [shape: f32[2,32,1], index: 4, kind: input, shape index: {}]
  %s5 = inlined_call_operand.vmem [shape: bf16[32,32], index: 5, kind: input, shape index: {}]
  %s6 = inlined_call_operand.vmem [shape: f32[32,1], index: 6, kind: input, shape index: {}]
  %s7 = inlined_call_operand.vmem [shape: bf16[64,32], index: 7, kind: input, shape index: {}]
  %s8 = inlined_call_operand.vmem [shape: f32[64,1], index: 8, kind: input, shape index: {}]
  %s9 = inlined_call_operand.vmem [shape: bf16[64,32], index: 9, kind: input, shape index: {}]
  %s10 = inlined_call_operand.vmem [shape: f32[64,1], index: 10, kind: input, shape index: {}]
  %s11 = inlined_call_operand.vmem [shape: bf16[64,32], index: 11, kind: input, shape index: {}]
  %s12 = inlined_call_operand.vmem [shape: f32[64,1], index: 12, kind: input, shape index: {}]
  %s13 = inlined_call_operand.vmem [shape: bf16[64,32], index: 13, kind: input, shape index: {}]
  %s14 = inlined_call_operand.vmem [shape: f32[64,1], index: 14, kind: input, shape index: {}]
  %s15 = inlined_call_operand.vmem [shape: bf16[64,32], index: 15, kind: input, shape index: {}]
  %s16 = inlined_call_operand.vmem [shape: f32[64,1], index: 16, kind: input, shape index: {}]
  %s17 = inlined_call_operand.vmem [shape: bf16[8,32], index: 17, kind: input, shape index: {}]
  %s18 = inlined_call_operand.vmem [shape: f32[8,1], index: 18, kind: input, shape index: {}]
  %s19 = inlined_call_operand.vmem [shape: f32[2,8,64], index: 19, kind: output, shape index: {}]
  %s20 = sld [smem:[#allocation0]]
  $region113: #{_lambda_.1} parent=0
    _
  %s22 = ssub.s32 1, %s20
  %s23 = scalar_select 0, %s22, %s20
  $region1: #{_lambda_.1} parent=0
    #allocation2 [shape = 'u8[512]{0}', space=smem, size = 0x200, scoped, tag = 'input window, operand 0, single buffered']
    #allocation3 [shape = 's32[2]{0}', space=sflag, size = 0x8, scoped, tag = 'scoped memory for _lambda_.1']
    %24 = vsyncpa [#allocation3], 0
    loop: start=0, step=1, limit=4
    $region2: #{_lambda_.1} parent=1 // loop_pre_header
      _
    $region3: #{_lambda_.1} parent=1 // loop_header
      %s26 = sphi 0, %s30
      %p27 = scmp.ge.s32.totalorder %s26, 4
      %s33 = sphi 0, %s45
      %s34 = sphi 0, %s41
      %s35 = sphi 0, %s33
      %s36 = sphi 0, %s34
      %s37 = sphi 0, %s35
      %s38 = sphi 0, %s36
      %s46 = sphi 0, %s46
      %s48 = sphi 0, %s46
      %s49 = sphi 0, %s48
      %s63 = sphi 0, %s49
      %s71 = sphi 0, %s73
      %s74 = sphi 0, %s71
      %s75 = sphi 0, %s74
      %s91 = sphi 0, %s75
      %s99 = sphi 0, %s101
      %s102 = sphi 0, %s99
      %s103 = sphi 0, %s102
      %s119 = sphi 0, %s103
      %s123 = sphi 0, %s123
      %s125 = sphi 0, %s123
      %s126 = sphi 0, %s125
      %s140 = sphi 0, %s126
      %s144 = sphi 0, %s144
      %s146 = sphi 0, %s144
      %s147 = sphi 0, %s146
      %s161 = sphi 0, %s147
      %s165 = sphi 0, %s165
      %s167 = sphi 0, %s165
      %s168 = sphi 0, %s167
      %s182 = sphi 0, %s168
      %s186 = sphi 0, %s186
      %s188 = sphi 0, %s186
      %s189 = sphi 0, %s188
      %s203 = sphi 0, %s189
      %s207 = sphi 0, %s207
      %s209 = sphi 0, %s207
      %s210 = sphi 0, %s209
      %s224 = sphi 0, %s210
      %s228 = sphi 0, %s228
      %s230 = sphi 0, %s228
      %s231 = sphi 0, %s230
      %s245 = sphi 0, %s231
      %s249 = sphi 0, %s249
      %s251 = sphi 0, %s249
      %s252 = sphi 0, %s251
      %s266 = sphi 0, %s252
      %s270 = sphi 0, %s270
      %s272 = sphi 0, %s270
      %s273 = sphi 0, %s272
      %s287 = sphi 0, %s273
      %s291 = sphi 0, %s291
      %s293 = sphi 0, %s291
      %s294 = sphi 0, %s293
      %s308 = sphi 0, %s294
      %s312 = sphi 0, %s312
      %s314 = sphi 0, %s312
      %s315 = sphi 0, %s314
      %s329 = sphi 0, %s315
      %s333 = sphi 0, %s333
      %s335 = sphi 0, %s333
      %s336 = sphi 0, %s335
      %s350 = sphi 0, %s336
      %s354 = sphi 0, %s354
      %s356 = sphi 0, %s354
      %s357 = sphi 0, %s356
      %s371 = sphi 0, %s357
      %s375 = sphi 0, %s375
      %s377 = sphi 0, %s375
      %s378 = sphi 0, %s377
      %s392 = sphi 0, %s378
      %s396 = sphi 0, %s396
      %s398 = sphi 0, %s396
      %s399 = sphi 0, %s398
      %s413 = sphi 0, %s399
      %s417 = sphi 0, %s417
      %s419 = sphi 0, %s417
      %s420 = sphi 0, %s419
      %s434 = sphi 0, %s420
      %s438 = sphi 0, %s438
      %s440 = sphi 0, %s438
      %s441 = sphi 0, %s440
      %s455 = sphi 0, %s441
      %s463 = sphi 0, %s465
      %s466 = sphi 0, %s463
      %s467 = sphi 0, %s466
      %s483 = sphi 0, %s467
    $region4: #{_lambda_.1} parent=1 // loop_header_branch
      %29 = sbr.rel (%p27) target = $region8
    $region5: #{_lambda_.1} parent=1 // loop_body
      %s31 = ssub.s32 %s26, 1
      %s32 = ssub.s32 %s26, 2
      %s39 = sadd.s32 1, %s34
      %p40 = scmp.ge.s32.totalorder %s39, 1
      %s41 = scalar_select %p40, 0, %s39
      %s42 = sadd.s32 1, %s33
      %s43 = scalar_select %p40, %s42, %s33
      %p44 = scmp.ge.s32.totalorder %s43, 2
      %s45 = scalar_select %p44, 0, %s43
      %s47 = sadd.s32 %s46, 1
      %p50 = scmp.eq.s32.totalorder %s26, 1
      %p51 = scmp.ne.s32.totalorder %s46, %s48
      %p52 = scmp.eq.s32.totalorder %s26, 0
      %p53 = por %p51, %p52
      %p54 = scmp.ne.s32.totalorder %s46, %s48
      %p55 = scmp.eq.s32.totalorder %s31, 1
      %p56 = por %p54, %p55
      %p57 = scmp.ne.s32.totalorder %s48, %s49
      %p58 = scmp.eq.s32.totalorder %s31, 0
      %p59 = por %p57, %p58
      %p60 = scmp.ne.s32.totalorder %s48, %s49
      %p61 = scmp.eq.s32.totalorder %s32, 1
      %p62 = por %p60, %p61
      %p64 = scmp.ne.s32.totalorder %s49, %s63
      %p65 = scmp.eq.s32.totalorder %s32, 0
      %p66 = por %p64, %p65
      %s67 = ssub.s32 %s33, %s45
      %s68 = ssub.s32 %s34, %s41
      %s69 = sor.u32 %s67, %s68
      %p70 = scmp.eq.s32.totalorder %s69, 0
      %s72 = sadd.s32 %s71, 1
      %s73 = scalar_select %p70, %s71, %s72
      %p76 = pneg %p70
      %p77 = scmp.eq.s32.totalorder %s26, 1
      %p78 = por %p76, %p77
      %p79 = scmp.ne.s32.totalorder %s71, %s74
      %p80 = scmp.eq.s32.totalorder %s26, 0
      %p81 = por %p79, %p80
      %p82 = scmp.ne.s32.totalorder %s71, %s74
      %p83 = scmp.eq.s32.totalorder %s31, 1
      %p84 = por %p82, %p83
      %p85 = scmp.ne.s32.totalorder %s74, %s75
      %p86 = scmp.eq.s32.totalorder %s31, 0
      %p87 = por %p85, %p86
      %p88 = scmp.ne.s32.totalorder %s74, %s75
      %p89 = scmp.eq.s32.totalorder %s32, 1
      %p90 = por %p88, %p89
      %p92 = scmp.ne.s32.totalorder %s75, %s91
      %p93 = scmp.eq.s32.totalorder %s32, 0
      %p94 = por %p92, %p93
      %s95 = ssub.s32 %s33, %s45
      %s96 = ssub.s32 %s34, %s41
      %s97 = sor.u32 %s95, %s96
      %p98 = scmp.eq.s32.totalorder %s97, 0
      %s100 = sadd.s32 %s99, 1
      %s101 = scalar_select %p98, %s99, %s100
      %p104 = pneg %p98
      %p105 = scmp.eq.s32.totalorder %s26, 1
      %p106 = por %p104, %p105
      %p107 = scmp.ne.s32.totalorder %s99, %s102
      %p108 = scmp.eq.s32.totalorder %s26, 0
      %p109 = por %p107, %p108
      %p110 = scmp.ne.s32.totalorder %s99, %s102
      %p111 = scmp.eq.s32.totalorder %s31, 1
      %p112 = por %p110, %p111
      %p113 = scmp.ne.s32.totalorder %s102, %s103
      %p114 = scmp.eq.s32.totalorder %s31, 0
      %p115 = por %p113, %p114
      %p116 = scmp.ne.s32.totalorder %s102, %s103
      %p117 = scmp.eq.s32.totalorder %s32, 1
      %p118 = por %p116, %p117
      %p120 = scmp.ne.s32.totalorder %s103, %s119
      %p121 = scmp.eq.s32.totalorder %s32, 0
      %p122 = por %p120, %p121
      %s124 = sadd.s32 %s123, 1
      %p127 = scmp.eq.s32.totalorder %s26, 1
      %p128 = scmp.ne.s32.totalorder %s123, %s125
      %p129 = scmp.eq.s32.totalorder %s26, 0
      %p130 = por %p128, %p129
      %p131 = scmp.ne.s32.totalorder %s123, %s125
      %p132 = scmp.eq.s32.totalorder %s31, 1
      %p133 = por %p131, %p132
      %p134 = scmp.ne.s32.totalorder %s125, %s126
      %p135 = scmp.eq.s32.totalorder %s31, 0
      %p136 = por %p134, %p135
      %p137 = scmp.ne.s32.totalorder %s125, %s126
      %p138 = scmp.eq.s32.totalorder %s32, 1
      %p139 = por %p137, %p138
      %p141 = scmp.ne.s32.totalorder %s126, %s140
      %p142 = scmp.eq.s32.totalorder %s32, 0
      %p143 = por %p141, %p142
      %s145 = sadd.s32 %s144, 1
      %p148 = scmp.eq.s32.totalorder %s26, 1
      %p149 = scmp.ne.s32.totalorder %s144, %s146
      %p150 = scmp.eq.s32.totalorder %s26, 0
      %p151 = por %p149, %p150
      %p152 = scmp.ne.s32.totalorder %s144, %s146
      %p153 = scmp.eq.s32.totalorder %s31, 1
      %p154 = por %p152, %p153
      %p155 = scmp.ne.s32.totalorder %s146, %s147
      %p156 = scmp.eq.s32.totalorder %s31, 0
      %p157 = por %p155, %p156
      %p158 = scmp.ne.s32.totalorder %s146, %s147
      %p159 = scmp.eq.s32.totalorder %s32, 1
      %p160 = por %p158, %p159
      %p162 = scmp.ne.s32.totalorder %s147, %s161
      %p163 = scmp.eq.s32.totalorder %s32, 0
      %p164 = por %p162, %p163
      %s166 = sadd.s32 %s165, 1
      %p169 = scmp.eq.s32.totalorder %s26, 1
      %p170 = scmp.ne.s32.totalorder %s165, %s167
      %p171 = scmp.eq.s32.totalorder %s26, 0
      %p172 = por %p170, %p171
      %p173 = scmp.ne.s32.totalorder %s165, %s167
      %p174 = scmp.eq.s32.totalorder %s31, 1
      %p175 = por %p173, %p174
      %p176 = scmp.ne.s32.totalorder %s167, %s168
      %p177 = scmp.eq.s32.totalorder %s31, 0
      %p178 = por %p176, %p177
      %p179 = scmp.ne.s32.totalorder %s167, %s168
      %p180 = scmp.eq.s32.totalorder %s32, 1
      %p181 = por %p179, %p180
      %p183 = scmp.ne.s32.totalorder %s168, %s182
      %p184 = scmp.eq.s32.totalorder %s32, 0
      %p185 = por %p183, %p184
      %s187 = sadd.s32 %s186, 1
      %p190 = scmp.eq.s32.totalorder %s26, 1
      %p191 = scmp.ne.s32.totalorder %s186, %s188
      %p192 = scmp.eq.s32.totalorder %s26, 0
      %p193 = por %p191, %p192
      %p194 = scmp.ne.s32.totalorder %s186, %s188
      %p195 = scmp.eq.s32.totalorder %s31, 1
      %p196 = por %p194, %p195
      %p197 = scmp.ne.s32.totalorder %s188, %s189
      %p198 = scmp.eq.s32.totalorder %s31, 0
      %p199 = por %p197, %p198
      %p200 = scmp.ne.s32.totalorder %s188, %s189
      %p201 = scmp.eq.s32.totalorder %s32, 1
      %p202 = por %p200, %p201
      %p204 = scmp.ne.s32.totalorder %s189, %s203
      %p205 = scmp.eq.s32.totalorder %s32, 0
      %p206 = por %p204, %p205
      %s208 = sadd.s32 %s207, 1
      %p211 = scmp.eq.s32.totalorder %s26, 1
      %p212 = scmp.ne.s32.totalorder %s207, %s209
      %p213 = scmp.eq.s32.totalorder %s26, 0
      %p214 = por %p212, %p213
      %p215 = scmp.ne.s32.totalorder %s207, %s209
      %p216 = scmp.eq.s32.totalorder %s31, 1
      %p217 = por %p215, %p216
      %p218 = scmp.ne.s32.totalorder %s209, %s210
      %p219 = scmp.eq.s32.totalorder %s31, 0
      %p220 = por %p218, %p219
      %p221 = scmp.ne.s32.totalorder %s209, %s210
      %p222 = scmp.eq.s32.totalorder %s32, 1
      %p223 = por %p221, %p222
      %p225 = scmp.ne.s32.totalorder %s210, %s224
      %p226 = scmp.eq.s32.totalorder %s32, 0
      %p227 = por %p225, %p226
      %s229 = sadd.s32 %s228, 1
      %p232 = scmp.eq.s32.totalorder %s26, 1
      %p233 = scmp.ne.s32.totalorder %s228, %s230
      %p234 = scmp.eq.s32.totalorder %s26, 0
      %p235 = por %p233, %p234
      %p236 = scmp.ne.s32.totalorder %s228, %s230
      %p237 = scmp.eq.s32.totalorder %s31, 1
      %p238 = por %p236, %p237
      %p239 = scmp.ne.s32.totalorder %s230, %s231
      %p240 = scmp.eq.s32.totalorder %s31, 0
      %p241 = por %p239, %p240
      %p242 = scmp.ne.s32.totalorder %s230, %s231
      %p243 = scmp.eq.s32.totalorder %s32, 1
      %p244 = por %p242, %p243
      %p246 = scmp.ne.s32.totalorder %s231, %s245
      %p247 = scmp.eq.s32.totalorder %s32, 0
      %p248 = por %p246, %p247
      %s250 = sadd.s32 %s249, 1
      %p253 = scmp.eq.s32.totalorder %s26, 1
      %p254 = scmp.ne.s32.totalorder %s249, %s251
      %p255 = scmp.eq.s32.totalorder %s26, 0
      %p256 = por %p254, %p255
      %p257 = scmp.ne.s32.totalorder %s249, %s251
      %p258 = scmp.eq.s32.totalorder %s31, 1
      %p259 = por %p257, %p258
      %p260 = scmp.ne.s32.totalorder %s251, %s252
      %p261 = scmp.eq.s32.totalorder %s31, 0
      %p262 = por %p260, %p261
      %p263 = scmp.ne.s32.totalorder %s251, %s252
      %p264 = scmp.eq.s32.totalorder %s32, 1
      %p265 = por %p263, %p264
      %p267 = scmp.ne.s32.totalorder %s252, %s266
      %p268 = scmp.eq.s32.totalorder %s32, 0
      %p269 = por %p267, %p268
      %s271 = sadd.s32 %s270, 1
      %p274 = scmp.eq.s32.totalorder %s26, 1
      %p275 = scmp.ne.s32.totalorder %s270, %s272
      %p276 = scmp.eq.s32.totalorder %s26, 0
      %p277 = por %p275, %p276
      %p278 = scmp.ne.s32.totalorder %s270, %s272
      %p279 = scmp.eq.s32.totalorder %s31, 1
      %p280 = por %p278, %p279
      %p281 = scmp.ne.s32.totalorder %s272, %s273
      %p282 = scmp.eq.s32.totalorder %s31, 0
      %p283 = por %p281, %p282
      %p284 = scmp.ne.s32.totalorder %s272, %s273
      %p285 = scmp.eq.s32.totalorder %s32, 1
      %p286 = por %p284, %p285
      %p288 = scmp.ne.s32.totalorder %s273, %s287
      %p289 = scmp.eq.s32.totalorder %s32, 0
      %p290 = por %p288, %p289
      %s292 = sadd.s32 %s291, 1
      %p295 = scmp.eq.s32.totalorder %s26, 1
      %p296 = scmp.ne.s32.totalorder %s291, %s293
      %p297 = scmp.eq.s32.totalorder %s26, 0
      %p298 = por %p296, %p297
      %p299 = scmp.ne.s32.totalorder %s291, %s293
      %p300 = scmp.eq.s32.totalorder %s31, 1
      %p301 = por %p299, %p300
      %p302 = scmp.ne.s32.totalorder %s293, %s294
      %p303 = scmp.eq.s32.totalorder %s31, 0
      %p304 = por %p302, %p303
      %p305 = scmp.ne.s32.totalorder %s293, %s294
      %p306 = scmp.eq.s32.totalorder %s32, 1
      %p307 = por %p305, %p306
      %p309 = scmp.ne.s32.totalorder %s294, %s308
      %p310 = scmp.eq.s32.totalorder %s32, 0
      %p311 = por %p309, %p310
      %s313 = sadd.s32 %s312, 1
      %p316 = scmp.eq.s32.totalorder %s26, 1
      %p317 = scmp.ne.s32.totalorder %s312, %s314
      %p318 = scmp.eq.s32.totalorder %s26, 0
      %p319 = por %p317, %p318
      %p320 = scmp.ne.s32.totalorder %s312, %s314
      %p321 = scmp.eq.s32.totalorder %s31, 1
      %p322 = por %p320, %p321
      %p323 = scmp.ne.s32.totalorder %s314, %s315
      %p324 = scmp.eq.s32.totalorder %s31, 0
      %p325 = por %p323, %p324
      %p326 = scmp.ne.s32.totalorder %s314, %s315
      %p327 = scmp.eq.s32.totalorder %s32, 1
      %p328 = por %p326, %p327
      %p330 = scmp.ne.s32.totalorder %s315, %s329
      %p331 = scmp.eq.s32.totalorder %s32, 0
      %p332 = por %p330, %p331
      %s334 = sadd.s32 %s333, 1
      %p337 = scmp.eq.s32.totalorder %s26, 1
      %p338 = scmp.ne.s32.totalorder %s333, %s335
      %p339 = scmp.eq.s32.totalorder %s26, 0
      %p340 = por %p338, %p339
      %p341 = scmp.ne.s32.totalorder %s333, %s335
      %p342 = scmp.eq.s32.totalorder %s31, 1
      %p343 = por %p341, %p342
      %p344 = scmp.ne.s32.totalorder %s335, %s336
      %p345 = scmp.eq.s32.totalorder %s31, 0
      %p346 = por %p344, %p345
      %p347 = scmp.ne.s32.totalorder %s335, %s336
      %p348 = scmp.eq.s32.totalorder %s32, 1
      %p349 = por %p347, %p348
      %p351 = scmp.ne.s32.totalorder %s336, %s350
      %p352 = scmp.eq.s32.totalorder %s32, 0
      %p353 = por %p351, %p352
      %s355 = sadd.s32 %s354, 1
      %p358 = scmp.eq.s32.totalorder %s26, 1
      %p359 = scmp.ne.s32.totalorder %s354, %s356
      %p360 = scmp.eq.s32.totalorder %s26, 0
      %p361 = por %p359, %p360
      %p362 = scmp.ne.s32.totalorder %s354, %s356
      %p363 = scmp.eq.s32.totalorder %s31, 1
      %p364 = por %p362, %p363
      %p365 = scmp.ne.s32.totalorder %s356, %s357
      %p366 = scmp.eq.s32.totalorder %s31, 0
      %p367 = por %p365, %p366
      %p368 = scmp.ne.s32.totalorder %s356, %s357
      %p369 = scmp.eq.s32.totalorder %s32, 1
      %p370 = por %p368, %p369
      %p372 = scmp.ne.s32.totalorder %s357, %s371
      %p373 = scmp.eq.s32.totalorder %s32, 0
      %p374 = por %p372, %p373
      %s376 = sadd.s32 %s375, 1
      %p379 = scmp.eq.s32.totalorder %s26, 1
      %p380 = scmp.ne.s32.totalorder %s375, %s377
      %p381 = scmp.eq.s32.totalorder %s26, 0
      %p382 = por %p380, %p381
      %p383 = scmp.ne.s32.totalorder %s375, %s377
      %p384 = scmp.eq.s32.totalorder %s31, 1
      %p385 = por %p383, %p384
      %p386 = scmp.ne.s32.totalorder %s377, %s378
      %p387 = scmp.eq.s32.totalorder %s31, 0
      %p388 = por %p386, %p387
      %p389 = scmp.ne.s32.totalorder %s377, %s378
      %p390 = scmp.eq.s32.totalorder %s32, 1
      %p391 = por %p389, %p390
      %p393 = scmp.ne.s32.totalorder %s378, %s392
      %p394 = scmp.eq.s32.totalorder %s32, 0
      %p395 = por %p393, %p394
      %s397 = sadd.s32 %s396, 1
      %p400 = scmp.eq.s32.totalorder %s26, 1
      %p401 = scmp.ne.s32.totalorder %s396, %s398
      %p402 = scmp.eq.s32.totalorder %s26, 0
      %p403 = por %p401, %p402
      %p404 = scmp.ne.s32.totalorder %s396, %s398
      %p405 = scmp.eq.s32.totalorder %s31, 1
      %p406 = por %p404, %p405
      %p407 = scmp.ne.s32.totalorder %s398, %s399
      %p408 = scmp.eq.s32.totalorder %s31, 0
      %p409 = por %p407, %p408
      %p410 = scmp.ne.s32.totalorder %s398, %s399
      %p411 = scmp.eq.s32.totalorder %s32, 1
      %p412 = por %p410, %p411
      %p414 = scmp.ne.s32.totalorder %s399, %s413
      %p415 = scmp.eq.s32.totalorder %s32, 0
      %p416 = por %p414, %p415
      %s418 = sadd.s32 %s417, 1
      %p421 = scmp.eq.s32.totalorder %s26, 1
      %p422 = scmp.ne.s32.totalorder %s417, %s419
      %p423 = scmp.eq.s32.totalorder %s26, 0
      %p424 = por %p422, %p423
      %p425 = scmp.ne.s32.totalorder %s417, %s419
      %p426 = scmp.eq.s32.totalorder %s31, 1
      %p427 = por %p425, %p426
      %p428 = scmp.ne.s32.totalorder %s419, %s420
      %p429 = scmp.eq.s32.totalorder %s31, 0
      %p430 = por %p428, %p429
      %p431 = scmp.ne.s32.totalorder %s419, %s420
      %p432 = scmp.eq.s32.totalorder %s32, 1
      %p433 = por %p431, %p432
      %p435 = scmp.ne.s32.totalorder %s420, %s434
      %p436 = scmp.eq.s32.totalorder %s32, 0
      %p437 = por %p435, %p436
      %s439 = sadd.s32 %s438, 1
      %p442 = scmp.eq.s32.totalorder %s26, 1
      %p443 = scmp.ne.s32.totalorder %s438, %s440
      %p444 = scmp.eq.s32.totalorder %s26, 0
      %p445 = por %p443, %p444
      %p446 = scmp.ne.s32.totalorder %s438, %s440
      %p447 = scmp.eq.s32.totalorder %s31, 1
      %p448 = por %p446, %p447
      %p449 = scmp.ne.s32.totalorder %s440, %s441
      %p450 = scmp.eq.s32.totalorder %s31, 0
      %p451 = por %p449, %p450
      %p452 = scmp.ne.s32.totalorder %s440, %s441
      %p453 = scmp.eq.s32.totalorder %s32, 1
      %p454 = por %p452, %p453
      %p456 = scmp.ne.s32.totalorder %s441, %s455
      %p457 = scmp.eq.s32.totalorder %s32, 0
      %p458 = por %p456, %p457
      %s459 = ssub.s32 %s33, %s45
      %s460 = ssub.s32 %s34, %s41
      %s461 = sor.u32 %s459, %s460
      %p462 = scmp.eq.s32.totalorder %s461, 0
      %s464 = sadd.s32 %s463, 1
      %s465 = scalar_select %p462, %s463, %s464
      %p468 = pneg %p462
      %p469 = scmp.eq.s32.totalorder %s26, 1
      %p470 = por %p468, %p469
      %p471 = scmp.ne.s32.totalorder %s463, %s466
      %p472 = scmp.eq.s32.totalorder %s26, 0
      %p473 = por %p471, %p472
      %p474 = scmp.ne.s32.totalorder %s463, %s466
      %p475 = scmp.eq.s32.totalorder %s31, 1
      %p476 = por %p474, %p475
      %p477 = scmp.ne.s32.totalorder %s466, %s467
      %p478 = scmp.eq.s32.totalorder %s31, 0
      %p479 = por %p477, %p478
      %p480 = scmp.ne.s32.totalorder %s466, %s467
      %p481 = scmp.eq.s32.totalorder %s32, 1
      %p482 = por %p480, %p481
      %p484 = scmp.ne.s32.totalorder %s467, %s483
      %p485 = scmp.eq.s32.totalorder %s32, 0
      %p486 = por %p484, %p485
      %p487 = scmp.le.s32.totalorder 1, %s26
      %p488 = scmp.lt.s32.totalorder %s26, 3
      %p489 = pnand %p487, %p488
      %p490 = pneg %p489
      // Predicated region
      $region9: #{_lambda_.1} parent=5 // pred_check
        _
      $region10: #{_lambda_.1} parent=5 // pred_check_branch
        %492 = sbr.rel (%p489) target = $region12
      $region11: #{_lambda_.1} parent=5 // pred_region
        %s493 = ssub.s32 %s26, 1
        // Predicated region
        $region13: #{_lambda_.1} parent=11 // pred_check
          %p494 = pneg %p59
        $region14: #{_lambda_.1} parent=11 // pred_check_branch
          %496 = sbr.rel (%p494) target = $region16
        $region15: #{_lambda_.1} parent=11 // pred_region
          %s498 = ssub.s32 16, 16
          %499 = vsyncadd [#allocation3], %s498
          %s501 = sshll.u32 %s0, 4
          %s502 = int_to_ptr.vmem [resolvable:$true] %s501
          %504 = dma.vmem_to_smem %s502, 16, [#allocation2], [#allocation3]
        $region16: #{_lambda_.1} parent=11 // pred_fallthru
          _
        // Predicated region
        $region17: #{_lambda_.1} parent=11 // pred_check
          %p505 = pneg %p136
        $region18: #{_lambda_.1} parent=11 // pred_check_branch
          %507 = sbr.rel (%p505) target = $region20
        $region19: #{_lambda_.1} parent=11 // pred_region
          _
        $region20: #{_lambda_.1} parent=11 // pred_fallthru
          _
        // Predicated region
        $region21: #{_lambda_.1} parent=11 // pred_check
          %p508 = pneg %p157
        $region22: #{_lambda_.1} parent=11 // pred_check_branch
          %510 = sbr.rel (%p508) target = $region24
        $region23: #{_lambda_.1} parent=11 // pred_region
          _
        $region24: #{_lambda_.1} parent=11 // pred_fallthru
          _
        // Predicated region
        $region25: #{_lambda_.1} parent=11 // pred_check
          %p511 = pneg %p178
        $region26: #{_lambda_.1} parent=11 // pred_check_branch
          %513 = sbr.rel (%p511) target = $region28
        $region27: #{_lambda_.1} parent=11 // pred_region
          _
        $region28: #{_lambda_.1} parent=11 // pred_fallthru
          _
        // Predicated region
        $region29: #{_lambda_.1} parent=11 // pred_check
          %p514 = pneg %p199
        $region30: #{_lambda_.1} parent=11 // pred_check_branch
          %516 = sbr.rel (%p514) target = $region32
        $region31: #{_lambda_.1} parent=11 // pred_region
          _
        $region32: #{_lambda_.1} parent=11 // pred_fallthru
          _
        // Predicated region
        $region33: #{_lambda_.1} parent=11 // pred_check
          %p517 = pneg %p220
        $region34: #{_lambda_.1} parent=11 // pred_check_branch
          %519 = sbr.rel (%p517) target = $region36
        $region35: #{_lambda_.1} parent=11 // pred_region
          _
        $region36: #{_lambda_.1} parent=11 // pred_fallthru
          _
        // Predicated region
        $region37: #{_lambda_.1} parent=11 // pred_check
          %p520 = pneg %p241
        $region38: #{_lambda_.1} parent=11 // pred_check_branch
          %522 = sbr.rel (%p520) target = $region40
        $region39: #{_lambda_.1} parent=11 // pred_region
          _
        $region40: #{_lambda_.1} parent=11 // pred_fallthru
          _
        // Predicated region
        $region41: #{_lambda_.1} parent=11 // pred_check
          %p523 = pneg %p262
        $region42: #{_lambda_.1} parent=11 // pred_check_branch
          %525 = sbr.rel (%p523) target = $region44
        $region43: #{_lambda_.1} parent=11 // pred_region
          _
        $region44: #{_lambda_.1} parent=11 // pred_fallthru
          _
        // Predicated region
        $region45: #{_lambda_.1} parent=11 // pred_check
          %p526 = pneg %p283
        $region46: #{_lambda_.1} parent=11 // pred_check_branch
          %528 = sbr.rel (%p526) target = $region48
        $region47: #{_lambda_.1} parent=11 // pred_region
          _
        $region48: #{_lambda_.1} parent=11 // pred_fallthru
          _
        // Predicated region
        $region49: #{_lambda_.1} parent=11 // pred_check
          %p529 = pneg %p304
        $region50: #{_lambda_.1} parent=11 // pred_check_branch
          %531 = sbr.rel (%p529) target = $region52
        $region51: #{_lambda_.1} parent=11 // pred_region
          _
        $region52: #{_lambda_.1} parent=11 // pred_fallthru
          _
        // Predicated region
        $region53: #{_lambda_.1} parent=11 // pred_check
          %p532 = pneg %p325
        $region54: #{_lambda_.1} parent=11 // pred_check_branch
          %534 = sbr.rel (%p532) target = $region56
        $region55: #{_lambda_.1} parent=11 // pred_region
          _
        $region56: #{_lambda_.1} parent=11 // pred_fallthru
          _
        // Predicated region
        $region57: #{_lambda_.1} parent=11 // pred_check
          %p535 = pneg %p346
        $region58: #{_lambda_.1} parent=11 // pred_check_branch
          %537 = sbr.rel (%p535) target = $region60
        $region59: #{_lambda_.1} parent=11 // pred_region
          _
        $region60: #{_lambda_.1} parent=11 // pred_fallthru
          _
        // Predicated region
        $region61: #{_lambda_.1} parent=11 // pred_check
          %p538 = pneg %p367
        $region62: #{_lambda_.1} parent=11 // pred_check_branch
          %540 = sbr.rel (%p538) target = $region64
        $region63: #{_lambda_.1} parent=11 // pred_region
          _
        $region64: #{_lambda_.1} parent=11 // pred_fallthru
          _
        // Predicated region
        $region65: #{_lambda_.1} parent=11 // pred_check
          %p541 = pneg %p388
        $region66: #{_lambda_.1} parent=11 // pred_check_branch
          %543 = sbr.rel (%p541) target = $region68
        $region67: #{_lambda_.1} parent=11 // pred_region
          _
        $region68: #{_lambda_.1} parent=11 // pred_fallthru
          _
        // Predicated region
        $region69: #{_lambda_.1} parent=11 // pred_check
          %p544 = pneg %p409
        $region70: #{_lambda_.1} parent=11 // pred_check_branch
          %546 = sbr.rel (%p544) target = $region72
        $region71: #{_lambda_.1} parent=11 // pred_region
          _
        $region72: #{_lambda_.1} parent=11 // pred_fallthru
          _
        // Predicated region
        $region73: #{_lambda_.1} parent=11 // pred_check
          %p547 = pneg %p430
        $region74: #{_lambda_.1} parent=11 // pred_check_branch
          %549 = sbr.rel (%p547) target = $region76
        $region75: #{_lambda_.1} parent=11 // pred_region
          _
        $region76: #{_lambda_.1} parent=11 // pred_fallthru
          _
        // Predicated region
        $region77: #{_lambda_.1} parent=11 // pred_check
          %p550 = pneg %p451
        $region78: #{_lambda_.1} parent=11 // pred_check_branch
          %552 = sbr.rel (%p550) target = $region80
        $region79: #{_lambda_.1} parent=11 // pred_region
          _
        $region80: #{_lambda_.1} parent=11 // pred_fallthru
          _
      $region12: #{_lambda_.1} parent=5 // pred_fallthru
        _
      %p553 = scmp.lt.s32.totalorder %s26, 2
      // Predicated region
      $region81: #{_lambda_.1} parent=5 // pred_check
        %p554 = pneg %p553
      $region82: #{_lambda_.1} parent=5 // pred_check_branch
        %556 = sbr.rel (%p554) target = $region84
      $region83: #{_lambda_.1} parent=5 // pred_region
        // Predicated region
        $region85: #{_lambda_.1} parent=83 // pred_check
          %p557 = pneg %p81
        $region86: #{_lambda_.1} parent=83 // pred_check_branch
          %559 = sbr.rel (%p557) target = $region88
        $region87: #{_lambda_.1} parent=83 // pred_region
          %p560 = scmp.lt.s32.totalorder %s33, 1
          %s561 = scalar_select %p560, %s33, 1
          %p562 = scmp.lt.s32.totalorder %s34, 0
          %s563 = scalar_select %p562, %s34, 0
          %s564 = smul.addr %s561, 4
          %s565 = sadd.s32 %s563, %s564
          %s566 = smul.addr %s565, 8
          %s567 = scalar_lea.vmem %s1, %s566
        $region88: #{_lambda_.1} parent=83 // pred_fallthru
          _
        // Predicated region
        $region89: #{_lambda_.1} parent=83 // pred_check
          %p568 = pneg %p109
        $region90: #{_lambda_.1} parent=83 // pred_check_branch
          %570 = sbr.rel (%p568) target = $region92
        $region91: #{_lambda_.1} parent=83 // pred_region
          %p571 = scmp.lt.s32.totalorder %s33, 1
          %s572 = scalar_select %p571, %s33, 1
          %p573 = scmp.lt.s32.totalorder %s34, 0
          %s574 = scalar_select %p573, %s34, 0
          %s575 = smul.addr %s572, 4
          %s576 = sadd.s32 %s574, %s575
          %s577 = smul.addr %s576, 8
          %s578 = scalar_lea.vmem %s2, %s577
        $region92: #{_lambda_.1} parent=83 // pred_fallthru
          _
      $region84: #{_lambda_.1} parent=5 // pred_fallthru
        _
      %p579 = scmp.le.s32.totalorder 1, %s26
      %p580 = scmp.lt.s32.totalorder %s26, 3
      %p581 = pnand %p579, %p580
      %p582 = pneg %p581
      // Predicated region
      $region93: #{_lambda_.1} parent=5 // pred_check
        _
      $region94: #{_lambda_.1} parent=5 // pred_check_branch
        %584 = sbr.rel (%p581) target = $region96
      $region95: #{_lambda_.1} parent=5 // pred_region
        %s585 = ssub.s32 %s26, 1
        // Predicated region
        $region97: #{_lambda_.1} parent=95 // pred_check
          %p586 = pneg %p59
        $region98: #{_lambda_.1} parent=95 // pred_check_branch
          %588 = sbr.rel (%p586) target = $region100
        $region99: #{_lambda_.1} parent=95 // pred_region
          %589 = dma.done [#allocation3], 16
        $region100: #{_lambda_.1} parent=95 // pred_fallthru
          _
        %590 = sfence
        %p591 = pneg %p59
        %p592 = pneg %p56
        %p593 = scmp.lt.s32.totalorder %s35, 1
        %s594 = scalar_select %p593, %s35, 1
        %p595 = scmp.lt.s32.totalorder %s36, 0
        %s596 = scalar_select %p595, %s36, 0
        %s597 = smul.addr %s594, 4
        %s598 = sadd.s32 %s596, %s597
        %s599 = smul.addr %s598, 8
        %s600 = scalar_lea.vmem %s1, %s599
        %p601 = pneg %p87
        %p602 = pneg %p84
        %p603 = scmp.lt.s32.totalorder %s35, 1
        %s604 = scalar_select %p603, %s35, 1
        %p605 = scmp.lt.s32.totalorder %s36, 0
        %s606 = scalar_select %p605, %s36, 0
        %s607 = smul.addr %s604, 4
        %s608 = sadd.s32 %s606, %s607
        %s609 = smul.addr %s608, 8
        %s610 = scalar_lea.vmem %s2, %s609
        %p611 = pneg %p115
        %p612 = pneg %p112
        %p613 = pneg %p136
        %p614 = pneg %p133
        %p615 = pneg %p157
        %p616 = pneg %p154
        %p617 = pneg %p178
        %p618 = pneg %p175
        %p619 = pneg %p199
        %p620 = pneg %p196
        %p621 = pneg %p220
        %p622 = pneg %p217
        %p623 = pneg %p241
        %p624 = pneg %p238
        %p625 = pneg %p262
        %p626 = pneg %p259
        %p627 = pneg %p283
        %p628 = pneg %p280
        %p629 = pneg %p304
        %p630 = pneg %p301
        %p631 = pneg %p325
        %p632 = pneg %p322
        %p633 = pneg %p346
        %p634 = pneg %p343
        %p635 = pneg %p367
        %p636 = pneg %p364
        %p637 = pneg %p388
        %p638 = pneg %p385
        %p639 = pneg %p409
        %p640 = pneg %p406
        %p641 = pneg %p430
        %p642 = pneg %p427
        %p643 = pneg %p451
        %p644 = pneg %p448
        %p645 = pneg %p479
        %p646 = pneg %p476
        %p647 = scmp.lt.s32.totalorder %s35, 1
        %s648 = scalar_select %p647, %s35, 1
        %p649 = scmp.lt.s32.totalorder %s36, 0
        %s650 = scalar_select %p649, %s36, 0
        %s651 = sadd.s32 %s650, %s648
        %s652 = smul.addr %s651, 8
        %s653 = scalar_lea.vmem %s19, %s652
        %p654 = scmp.lt.s32.totalorder %s35, 1
        %s655 = scalar_select %p654, %s35, 1
        %p656 = scmp.lt.s32.totalorder %s36, 0
        %s657 = scalar_select %p656, %s36, 0
        %s658 = smul.addr %s655, 4
        %s659 = sadd.s32 %s657, %s658
        %s660 = smul.addr %s659, 8
        %s661 = scalar_lea.vmem %s1, %s660
        %p662 = scmp.lt.s32.totalorder %s35, 1
        %s663 = scalar_select %p662, %s35, 1
        %p664 = scmp.lt.s32.totalorder %s36, 0
        %s665 = scalar_select %p664, %s36, 0
        %s666 = smul.addr %s663, 4
        %s667 = sadd.s32 %s665, %s666
        %s668 = smul.addr %s667, 8
        %s669 = scalar_lea.vmem %s2, %s668
        %p670 = scmp.lt.s32.totalorder %s35, 1
        %s671 = scalar_select %p670, %s35, 1
        %p672 = scmp.lt.s32.totalorder %s36, 0
        %s673 = scalar_select %p672, %s36, 0
        %s674 = sadd.s32 %s673, %s671
        %s675 = smul.addr %s674, 8
        %s676 = scalar_lea.vmem %s19, %s675
        %v678 = vld [vmem:[%s661] sm:$0xff]
        %v679 = vld [vmem:[%s661 + $0x8] sm:$0xff]
        %v680 = vld [vmem:[%s661 + $0x10] sm:$0xff]
        %v681 = vld [vmem:[%s661 + $0x18] sm:$0xff]
        %v682 = vld [vmem:[%s3] sm:$0xf]
        %v683 = vld [vmem:[%s3 + $0x4] sm:$0xf]
        %v684 = vld [vmem:[%s3 + $0x8] sm:$0xf]
        %v685 = vld [vmem:[%s3 + $0xc] sm:$0xf]
        %v686 = vpack.c.bf16 %v679, %v678
        %v687 = vpack.c.bf16 %v681, %v680
        %v688 = vld [vmem:[%s4] sm:$0xff]
        %v689 = vld [vmem:[%s4 + $0x8] sm:$0xff]
        %v690 = vld [vmem:[%s4 + $0x10] sm:$0xff]
        %v691 = vld [vmem:[%s4 + $0x18] sm:$0xff]
        %693 = vset.pattern.permute.xlu0 0
        %694 = vperm.xlu0 %693, %v688
        %v695 = vpop.permute.xlu0 %694
        %698 = vset.pattern.permute.xlu0 0
        %699 = vperm.xlu0 %698, %v689
        %v700 = vpop.permute.xlu0 %699
        %703 = vset.pattern.permute.xlu0 0
        %704 = vperm.xlu0 %703, %v690
        %v705 = vpop.permute.xlu0 %704
        %708 = vset.pattern.permute.xlu0 0
        %709 = vperm.xlu0 %708, %v691
        %v710 = vpop.permute.xlu0 %709
        %v716 = vunpack.c.l.b16 %v682
        %v717 = vunpack.c.l.b16 %v683
        %v718 = vunpack.c.l.b16 %v684
        %v719 = vunpack.c.l.b16 %v685
        %v720 = vpack.c.b16 %v717, %v716
        %v721 = vpack.c.b16 %v719, %v718
        %vm722 = vcmask 261120
        %v724 = vsel %vm722, %v720, 0
        %v727 = vsel %vm722, %v721, 0
        %729 = vmatprep.subr.bf16.mxu0 0
        %730 = vmatpush1.bf16.msra.mxu0 0
        %731 = vmatprep.subr.bf16.mxu0 0
        %732 = vmatpush1.bf16.msra.mxu0 0
        %733 = vmatprep.subr.bf16.mxu0 0
        %734 = vmatpush1.bf16.msra.mxu0 0
        %735 = vmatprep.subr.bf16.mxu0 0
        %736 = vmatpush1.bf16.msra.mxu0 0
        %737 = vmatprep.subr.bf16.mxu0 0
        %738 = vmatpush1.bf16.msra.mxu0 0
        %739 = vmatprep.subr.bf16.mxu0 0
        %740 = vmatpush1.bf16.msra.mxu0 0
        %741 = vmatprep.subr.bf16.mxu0 0
        %742 = vmatpush1.bf16.msra.mxu0 %v687
        %743 = vmatprep.subr.bf16.mxu0 0
        %744 = vmatpush1.bf16.msra.mxu0 %v686
        %745 = vmatprep.subr.bf16.mxu0 0
        %746 = vmatpush2.bf16.msra.mxu0 0
        %747 = vmatprep.subr.bf16.mxu0 0
        %748 = vmatpush2.bf16.msra.mxu0 0
        %749 = vmatprep.subr.bf16.mxu0 0
        %750 = vmatpush2.bf16.msra.mxu0 0
        %751 = vmatprep.subr.bf16.mxu0 0
        %752 = vmatpush2.bf16.msra.mxu0 0
        %753 = vmatprep.subr.bf16.mxu0 0
        %754 = vmatpush2.bf16.msra.mxu0 0
        %755 = vmatprep.subr.bf16.mxu0 0
        %756 = vmatpush2.bf16.msra.mxu0 0
        %757 = vmatprep.subr.bf16.mxu0 0
        %758 = vmatpush2.bf16.msra.mxu0 0
        %759 = vmatprep.subr.bf16.mxu0 0
        %760 = vmatpush2.bf16.msra.mxu0 0
        %761 = vmatprep.mubr.bf16.mxu0 0
        %762 = vmatmul.mubr.bf16.gmra.mxu0 %v724
        %v763 = vpop.f32.mrf.mxu0
        %v764 = vadd.f32 %v695, %v763
        %v765 = vpop.f32.mrf.mxu0
        %v766 = vpop.f32.mrf.mxu0
        %v767 = vadd.f32 %v700, %v766
        %v768 = vpop.f32.mrf.mxu0
        %769 = vmatprep.mubr.bf16.mxu0 0
        %770 = vmatmul.mubr.bf16.gmra.mxu0 %v727
        %v771 = vpop.f32.mrf.mxu0
        %v772 = vadd.f32 %v705, %v771
        %v773 = vpop.f32.mrf.mxu0
        %v774 = vpop.f32.mrf.mxu0
        %v775 = vadd.f32 %v710, %v774
        %v776 = vpop.f32.mrf.mxu0
        %777 = vdwg.mxu0
        %v778 = vmax.f32 %v764, 0.0
        %v779 = vmax.f32 %v767, 0.0
        %v780 = vmax.f32 %v772, 0.0
        %v781 = vmax.f32 %v775, 0.0
        %s782 = scalar_lea.vmem %s3, 16
        %v783 = vld [vmem:[%s782] sm:$0xf]
        %v784 = vld [vmem:[%s782 + $0x4] sm:$0xf]
        %v785 = vld [vmem:[%s782 + $0x8] sm:$0xf]
        %v786 = vld [vmem:[%s782 + $0xc] sm:$0xf]
        %v787 = vpack.c.bf16 %v779, %v778
        %v788 = vpack.c.bf16 %v781, %v780
        %s789 = scalar_lea.vmem %s4, 32
        %v790 = vld [vmem:[%s789] sm:$0xff]
        %v791 = vld [vmem:[%s789 + $0x8] sm:$0xff]
        %v792 = vld [vmem:[%s789 + $0x10] sm:$0xff]
        %v793 = vld [vmem:[%s789 + $0x18] sm:$0xff]
        %795 = vset.pattern.permute.xlu0 0
        %796 = vperm.xlu0 %795, %v790
        %v797 = vpop.permute.xlu0 %796
        %800 = vset.pattern.permute.xlu0 0
        %801 = vperm.xlu0 %800, %v791
        %v802 = vpop.permute.xlu0 %801
        %805 = vset.pattern.permute.xlu0 0
        %806 = vperm.xlu0 %805, %v792
        %v807 = vpop.permute.xlu0 %806
        %810 = vset.pattern.permute.xlu0 0
        %811 = vperm.xlu0 %810, %v793
        %v812 = vpop.permute.xlu0 %811
        %v818 = vunpack.c.l.b16 %v783
        %v819 = vunpack.c.l.b16 %v784
        %v820 = vunpack.c.l.b16 %v785
        %v821 = vunpack.c.l.b16 %v786
        %v822 = vpack.c.b16 %v819, %v818
        %v823 = vpack.c.b16 %v821, %v820
        %v825 = vsel %vm722, %v822, 0
        %v828 = vsel %vm722, %v823, 0
        %830 = vmatprep.subr.bf16.mxu0 0
        %831 = vmatpush1.bf16.msra.mxu0 0
        %832 = vmatprep.subr.bf16.mxu0 0
        %833 = vmatpush1.bf16.msra.mxu0 0
        %834 = vmatprep.subr.bf16.mxu0 0
        %835 = vmatpush1.bf16.msra.mxu0 0
        %836 = vmatprep.subr.bf16.mxu0 0
        %837 = vmatpush1.bf16.msra.mxu0 0
        %838 = vmatprep.subr.bf16.mxu0 0
        %839 = vmatpush1.bf16.msra.mxu0 0
        %840 = vmatprep.subr.bf16.mxu0 0
        %841 = vmatpush1.bf16.msra.mxu0 0
        %842 = vmatprep.subr.bf16.mxu0 0
        %843 = vmatpush1.bf16.msra.mxu0 %v788
        %844 = vmatprep.subr.bf16.mxu0 0
        %845 = vmatpush1.bf16.msra.mxu0 %v787
        %846 = vmatprep.subr.bf16.mxu0 0
        %847 = vmatpush2.bf16.msra.mxu0 0
        %848 = vmatprep.subr.bf16.mxu0 0
        %849 = vmatpush2.bf16.msra.mxu0 0
        %850 = vmatprep.subr.bf16.mxu0 0
        %851 = vmatpush2.bf16.msra.mxu0 0
        %852 = vmatprep.subr.bf16.mxu0 0
        %853 = vmatpush2.bf16.msra.mxu0 0
        %854 = vmatprep.subr.bf16.mxu0 0
        %855 = vmatpush2.bf16.msra.mxu0 0
        %856 = vmatprep.subr.bf16.mxu0 0
        %857 = vmatpush2.bf16.msra.mxu0 0
        %858 = vmatprep.subr.bf16.mxu0 0
        %859 = vmatpush2.bf16.msra.mxu0 0
        %860 = vmatprep.subr.bf16.mxu0 0
        %861 = vmatpush2.bf16.msra.mxu0 0
        %862 = vmatprep.mubr.bf16.mxu0 0
        %863 = vmatmul.mubr.bf16.gmra.mxu0 %v825
        %v864 = vpop.f32.mrf.mxu0
        %v865 = vadd.f32 %v797, %v864
        %v866 = vpop.f32.mrf.mxu0
        %v867 = vpop.f32.mrf.mxu0
        %v868 = vadd.f32 %v802, %v867
        %v869 = vpop.f32.mrf.mxu0
        %870 = vmatprep.mubr.bf16.mxu0 0
        %871 = vmatmul.mubr.bf16.gmra.mxu0 %v828
        %v872 = vpop.f32.mrf.mxu0
        %v873 = vadd.f32 %v807, %v872
        %v874 = vpop.f32.mrf.mxu0
        %v875 = vpop.f32.mrf.mxu0
        %v876 = vadd.f32 %v812, %v875
        %v877 = vpop.f32.mrf.mxu0
        %878 = vdwg.mxu0
        %v879 = vmax.f32 %v865, 0.0
        %v880 = vmax.f32 %v868, 0.0
        %v881 = vmax.f32 %v873, 0.0
        %v882 = vmax.f32 %v876, 0.0
        %v883 = vld [vmem:[%s5] sm:$0xf]
        %v884 = vld [vmem:[%s5 + $0x4] sm:$0xf]
        %v885 = vld [vmem:[%s5 + $0x8] sm:$0xf]
        %v886 = vld [vmem:[%s5 + $0xc] sm:$0xf]
        %v887 = vpack.c.bf16 %v880, %v879
        %v888 = vpack.c.bf16 %v882, %v881
        %v889 = vld [vmem:[%s6] sm:$0xff]
        %v890 = vld [vmem:[%s6 + $0x8] sm:$0xff]
        %v891 = vld [vmem:[%s6 + $0x10] sm:$0xff]
        %v892 = vld [vmem:[%s6 + $0x18] sm:$0xff]
        %894 = vset.pattern.permute.xlu0 0
        %895 = vperm.xlu0 %894, %v889
        %v896 = vpop.permute.xlu0 %895
        %899 = vset.pattern.permute.xlu0 0
        %900 = vperm.xlu0 %899, %v890
        %v901 = vpop.permute.xlu0 %900
        %904 = vset.pattern.permute.xlu0 0
        %905 = vperm.xlu0 %904, %v891
        %v906 = vpop.permute.xlu0 %905
        %909 = vset.pattern.permute.xlu0 0
        %910 = vperm.xlu0 %909, %v892
        %v911 = vpop.permute.xlu0 %910
        %v917 = vunpack.c.l.b16 %v883
        %v918 = vunpack.c.l.b16 %v884
        %v919 = vunpack.c.l.b16 %v885
        %v920 = vunpack.c.l.b16 %v886
        %v921 = vpack.c.b16 %v918, %v917
        %v922 = vpack.c.b16 %v920, %v919
        %v924 = vsel %vm722, %v921, 0
        %v927 = vsel %vm722, %v922, 0
        %929 = vmatprep.subr.bf16.mxu0 0
        %930 = vmatpush1.bf16.msra.mxu0 0
        %931 = vmatprep.subr.bf16.mxu0 0
        %932 = vmatpush1.bf16.msra.mxu0 0
        %933 = vmatprep.subr.bf16.mxu0 0
        %934 = vmatpush1.bf16.msra.mxu0 0
        %935 = vmatprep.subr.bf16.mxu0 0
        %936 = vmatpush1.bf16.msra.mxu0 0
        %937 = vmatprep.subr.bf16.mxu0 0
        %938 = vmatpush1.bf16.msra.mxu0 0
        %939 = vmatprep.subr.bf16.mxu0 0
        %940 = vmatpush1.bf16.msra.mxu0 0
        %941 = vmatprep.subr.bf16.mxu0 0
        %942 = vmatpush1.bf16.msra.mxu0 %v888
        %943 = vmatprep.subr.bf16.mxu0 0
        %944 = vmatpush1.bf16.msra.mxu0 %v887
        %945 = vmatprep.subr.bf16.mxu0 0
        %946 = vmatpush2.bf16.msra.mxu0 0
        %947 = vmatprep.subr.bf16.mxu0 0
        %948 = vmatpush2.bf16.msra.mxu0 0
        %949 = vmatprep.subr.bf16.mxu0 0
        %950 = vmatpush2.bf16.msra.mxu0 0
        %951 = vmatprep.subr.bf16.mxu0 0
        %952 = vmatpush2.bf16.msra.mxu0 0
        %953 = vmatprep.subr.bf16.mxu0 0
        %954 = vmatpush2.bf16.msra.mxu0 0
        %955 = vmatprep.subr.bf16.mxu0 0
        %956 = vmatpush2.bf16.msra.mxu0 0
        %957 = vmatprep.subr.bf16.mxu0 0
        %958 = vmatpush2.bf16.msra.mxu0 0
        %959 = vmatprep.subr.bf16.mxu0 0
        %960 = vmatpush2.bf16.msra.mxu0 0
        %961 = vmatprep.mubr.bf16.mxu0 0
        %962 = vmatmul.mubr.bf16.gmra.mxu0 %v924
        %v963 = vpop.f32.mrf.mxu0
        %v964 = vadd.f32 %v896, %v963
        %v965 = vpop.f32.mrf.mxu0
        %v966 = vpop.f32.mrf.mxu0
        %v967 = vadd.f32 %v901, %v966
        %v968 = vpop.f32.mrf.mxu0
        %969 = vmatprep.mubr.bf16.mxu0 0
        %970 = vmatmul.mubr.bf16.gmra.mxu0 %v927
        %v971 = vpop.f32.mrf.mxu0
        %v972 = vadd.f32 %v906, %v971
        %v973 = vpop.f32.mrf.mxu0
        %v974 = vpop.f32.mrf.mxu0
        %v975 = vadd.f32 %v911, %v974
        %v976 = vpop.f32.mrf.mxu0
        %977 = vdwg.mxu0
        %v978 = vld [vmem:[%s669] sm:$0xff]
        %v979 = vld [vmem:[%s669 + $0x8] sm:$0xff]
        %v980 = vld [vmem:[%s669 + $0x10] sm:$0xff]
        %v981 = vld [vmem:[%s669 + $0x18] sm:$0xff]
        %v982 = vpack.c.bf16 %v979, %v978
        %v983 = vpack.c.bf16 %v981, %v980
        %984 = vmatprep.subr.bf16.mxu0 0
        %985 = vmatpush1.bf16.msra.mxu0 0
        %986 = vmatprep.subr.bf16.mxu0 0
        %987 = vmatpush1.bf16.msra.mxu0 0
        %988 = vmatprep.subr.bf16.mxu0 0
        %989 = vmatpush1.bf16.msra.mxu0 0
        %990 = vmatprep.subr.bf16.mxu0 0
        %991 = vmatpush1.bf16.msra.mxu0 0
        %992 = vmatprep.subr.bf16.mxu0 0
        %993 = vmatpush1.bf16.msra.mxu0 0
        %994 = vmatprep.subr.bf16.mxu0 0
        %995 = vmatpush1.bf16.msra.mxu0 0
        %996 = vmatprep.subr.bf16.mxu0 0
        %997 = vmatpush1.bf16.msra.mxu0 %v983
        %998 = vmatprep.subr.bf16.mxu0 0
        %999 = vmatpush1.bf16.msra.mxu0 %v982
        %1000 = vmatprep.subr.bf16.mxu0 0
        %1001 = vmatpush2.bf16.msra.mxu0 0
        %1002 = vmatprep.subr.bf16.mxu0 0
        %1003 = vmatpush2.bf16.msra.mxu0 0
        %1004 = vmatprep.subr.bf16.mxu0 0
        %1005 = vmatpush2.bf16.msra.mxu0 0
        %1006 = vmatprep.subr.bf16.mxu0 0
        %1007 = vmatpush2.bf16.msra.mxu0 0
        %1008 = vmatprep.subr.bf16.mxu0 0
        %1009 = vmatpush2.bf16.msra.mxu0 0
        %1010 = vmatprep.subr.bf16.mxu0 0
        %1011 = vmatpush2.bf16.msra.mxu0 0
        %1012 = vmatprep.subr.bf16.mxu0 0
        %1013 = vmatpush2.bf16.msra.mxu0 0
        %1014 = vmatprep.subr.bf16.mxu0 0
        %1015 = vmatpush2.bf16.msra.mxu0 0
        %1016 = vmatprep.mubr.bf16.mxu0 0
        %1017 = vmatmul.mubr.bf16.gmra.mxu0 %v724
        %v1018 = vpop.f32.mrf.mxu0
        %v1019 = vadd.f32 %v695, %v1018
        %v1020 = vpop.f32.mrf.mxu0
        %v1021 = vpop.f32.mrf.mxu0
        %v1022 = vadd.f32 %v700, %v1021
        %v1023 = vpop.f32.mrf.mxu0
        %1024 = vmatprep.mubr.bf16.mxu0 0
        %1025 = vmatmul.mubr.bf16.gmra.mxu0 %v727
        %v1026 = vpop.f32.mrf.mxu0
        %v1027 = vadd.f32 %v705, %v1026
        %v1028 = vpop.f32.mrf.mxu0
        %v1029 = vpop.f32.mrf.mxu0
        %v1030 = vadd.f32 %v710, %v1029
        %v1031 = vpop.f32.mrf.mxu0
        %1032 = vdwg.mxu0
        %v1033 = vmax.f32 %v1019, 0.0
        %v1034 = vmax.f32 %v1022, 0.0
        %v1035 = vmax.f32 %v1027, 0.0
        %v1036 = vmax.f32 %v1030, 0.0
        %v1037 = vpack.c.bf16 %v1034, %v1033
        %v1038 = vpack.c.bf16 %v1036, %v1035
        %1039 = vmatprep.subr.bf16.mxu0 0
        %1040 = vmatpush1.bf16.msra.mxu0 0
        %1041 = vmatprep.subr.bf16.mxu0 0
        %1042 = vmatpush1.bf16.msra.mxu0 0
        %1043 = vmatprep.subr.bf16.mxu0 0
        %1044 = vmatpush1.bf16.msra.mxu0 0
        %1045 = vmatprep.subr.bf16.mxu0 0
        %1046 = vmatpush1.bf16.msra.mxu0 0
        %1047 = vmatprep.subr.bf16.mxu0 0
        %1048 = vmatpush1.bf16.msra.mxu0 0
        %1049 = vmatprep.subr.bf16.mxu0 0
        %1050 = vmatpush1.bf16.msra.mxu0 0
        %1051 = vmatprep.subr.bf16.mxu0 0
        %1052 = vmatpush1.bf16.msra.mxu0 %v1038
        %1053 = vmatprep.subr.bf16.mxu0 0
        %1054 = vmatpush1.bf16.msra.mxu0 %v1037
        %1055 = vmatprep.subr.bf16.mxu0 0
        %1056 = vmatpush2.bf16.msra.mxu0 0
        %1057 = vmatprep.subr.bf16.mxu0 0
        %1058 = vmatpush2.bf16.msra.mxu0 0
        %1059 = vmatprep.subr.bf16.mxu0 0
        %1060 = vmatpush2.bf16.msra.mxu0 0
        %1061 = vmatprep.subr.bf16.mxu0 0
        %1062 = vmatpush2.bf16.msra.mxu0 0
        %1063 = vmatprep.subr.bf16.mxu0 0
        %1064 = vmatpush2.bf16.msra.mxu0 0
        %1065 = vmatprep.subr.bf16.mxu0 0
        %1066 = vmatpush2.bf16.msra.mxu0 0
        %1067 = vmatprep.subr.bf16.mxu0 0
        %1068 = vmatpush2.bf16.msra.mxu0 0
        %1069 = vmatprep.subr.bf16.mxu0 0
        %1070 = vmatpush2.bf16.msra.mxu0 0
        %1071 = vmatprep.mubr.bf16.mxu0 0
        %1072 = vmatmul.mubr.bf16.gmra.mxu0 %v825
        %v1073 = vpop.f32.mrf.mxu0
        %v1074 = vadd.f32 %v797, %v1073
        %v1075 = vpop.f32.mrf.mxu0
        %v1076 = vpop.f32.mrf.mxu0
        %v1077 = vadd.f32 %v802, %v1076
        %v1078 = vpop.f32.mrf.mxu0
        %1079 = vmatprep.mubr.bf16.mxu0 0
        %1080 = vmatmul.mubr.bf16.gmra.mxu0 %v828
        %v1081 = vpop.f32.mrf.mxu0
        %v1082 = vadd.f32 %v807, %v1081
        %v1083 = vpop.f32.mrf.mxu0
        %v1084 = vpop.f32.mrf.mxu0
        %v1085 = vadd.f32 %v812, %v1084
        %v1086 = vpop.f32.mrf.mxu0
        %1087 = vdwg.mxu0
        %v1088 = vmax.f32 %v1074, 0.0
        %v1089 = vmax.f32 %v1077, 0.0
        %v1090 = vmax.f32 %v1082, 0.0
        %v1091 = vmax.f32 %v1085, 0.0
        %v1092 = vpack.c.bf16 %v1089, %v1088
        %v1093 = vpack.c.bf16 %v1091, %v1090
        %1094 = vmatprep.subr.bf16.mxu0 0
        %1095 = vmatpush1.bf16.msra.mxu0 0
        %1096 = vmatprep.subr.bf16.mxu0 0
        %1097 = vmatpush1.bf16.msra.mxu0 0
        %1098 = vmatprep.subr.bf16.mxu0 0
        %1099 = vmatpush1.bf16.msra.mxu0 0
        %1100 = vmatprep.subr.bf16.mxu0 0
        %1101 = vmatpush1.bf16.msra.mxu0 0
        %1102 = vmatprep.subr.bf16.mxu0 0
        %1103 = vmatpush1.bf16.msra.mxu0 0
        %1104 = vmatprep.subr.bf16.mxu0 0
        %1105 = vmatpush1.bf16.msra.mxu0 0
        %1106 = vmatprep.subr.bf16.mxu0 0
        %1107 = vmatpush1.bf16.msra.mxu0 %v1093
        %1108 = vmatprep.subr.bf16.mxu0 0
        %1109 = vmatpush1.bf16.msra.mxu0 %v1092
        %1110 = vmatprep.subr.bf16.mxu0 0
        %1111 = vmatpush2.bf16.msra.mxu0 0
        %1112 = vmatprep.subr.bf16.mxu0 0
        %1113 = vmatpush2.bf16.msra.mxu0 0
        %1114 = vmatprep.subr.bf16.mxu0 0
        %1115 = vmatpush2.bf16.msra.mxu0 0
        %1116 = vmatprep.subr.bf16.mxu0 0
        %1117 = vmatpush2.bf16.msra.mxu0 0
        %1118 = vmatprep.subr.bf16.mxu0 0
        %1119 = vmatpush2.bf16.msra.mxu0 0
        %1120 = vmatprep.subr.bf16.mxu0 0
        %1121 = vmatpush2.bf16.msra.mxu0 0
        %1122 = vmatprep.subr.bf16.mxu0 0
        %1123 = vmatpush2.bf16.msra.mxu0 0
        %1124 = vmatprep.subr.bf16.mxu0 0
        %1125 = vmatpush2.bf16.msra.mxu0 0
        %1126 = vmatprep.mubr.bf16.mxu0 0
        %1127 = vmatmul.mubr.bf16.gmra.mxu0 %v924
        %v1128 = vpop.f32.mrf.mxu0
        %v1129 = vadd.f32 %v896, %v1128
        %v1130 = vpop.f32.mrf.mxu0
        %v1131 = vpop.f32.mrf.mxu0
        %v1132 = vadd.f32 %v901, %v1131
        %v1133 = vpop.f32.mrf.mxu0
        %1134 = vmatprep.mubr.bf16.mxu0 0
        %1135 = vmatmul.mubr.bf16.gmra.mxu0 %v927
        %v1136 = vpop.f32.mrf.mxu0
        %v1137 = vadd.f32 %v906, %v1136
        %v1138 = vpop.f32.mrf.mxu0
        %v1139 = vpop.f32.mrf.mxu0
        %v1140 = vadd.f32 %v911, %v1139
        %v1141 = vpop.f32.mrf.mxu0
        %1142 = vdwg.mxu0
        %v1143 = vmul.f32 %v964, %v1129
        %v1144 = vmul.f32 %v967, %v1132
        %v1145 = vmul.f32 %v972, %v1137
        %v1146 = vmul.f32 %v975, %v1140
        %v1147 = vld [vmem:[%s7] sm:$0xf]
        %v1148 = vld [vmem:[%s7 + $0x4] sm:$0xf]
        %v1149 = vld [vmem:[%s7 + $0x8] sm:$0xf]
        %v1150 = vld [vmem:[%s7 + $0xc] sm:$0xf]
        %v1151 = vld [vmem:[%s7 + $0x10] sm:$0xf]
        %v1152 = vld [vmem:[%s7 + $0x14] sm:$0xf]
        %v1153 = vld [vmem:[%s7 + $0x18] sm:$0xf]
        %v1154 = vld [vmem:[%s7 + $0x1c] sm:$0xf]
        %v1155 = vld [vmem:[%s8] sm:$0xff]
        %v1156 = vld [vmem:[%s8 + $0x8] sm:$0xff]
        %v1157 = vld [vmem:[%s8 + $0x10] sm:$0xff]
        %v1158 = vld [vmem:[%s8 + $0x18] sm:$0xff]
        %v1159 = vld [vmem:[%s8 + $0x20] sm:$0xff]
        %v1160 = vld [vmem:[%s8 + $0x28] sm:$0xff]
        %v1161 = vld [vmem:[%s8 + $0x30] sm:$0xff]
        %v1162 = vld [vmem:[%s8 + $0x38] sm:$0xff]
        %v1163 = vpack.c.bf16 %v1144, %v1143
        %v1164 = vpack.c.bf16 %v1146, %v1145
        %1166 = vset.pattern.permute.xlu0 0
        %1167 = vperm.xlu0 %1166, %v1155
        %v1168 = vpop.permute.xlu0 %1167
        %1171 = vset.pattern.permute.xlu0 0
        %1172 = vperm.xlu0 %1171, %v1156
        %v1173 = vpop.permute.xlu0 %1172
        %1176 = vset.pattern.permute.xlu0 0
        %1177 = vperm.xlu0 %1176, %v1157
        %v1178 = vpop.permute.xlu0 %1177
        %1181 = vset.pattern.permute.xlu0 0
        %1182 = vperm.xlu0 %1181, %v1158
        %v1183 = vpop.permute.xlu0 %1182
        %1186 = vset.pattern.permute.xlu0 0
        %1187 = vperm.xlu0 %1186, %v1159
        %v1188 = vpop.permute.xlu0 %1187
        %1191 = vset.pattern.permute.xlu0 0
        %1192 = vperm.xlu0 %1191, %v1160
        %v1193 = vpop.permute.xlu0 %1192
        %1196 = vset.pattern.permute.xlu0 0
        %1197 = vperm.xlu0 %1196, %v1161
        %v1198 = vpop.permute.xlu0 %1197
        %1201 = vset.pattern.permute.xlu0 0
        %1202 = vperm.xlu0 %1201, %v1162
        %v1203 = vpop.permute.xlu0 %1202
        %v1213 = vunpack.c.l.b16 %v1147
        %v1214 = vunpack.c.l.b16 %v1148
        %v1215 = vunpack.c.l.b16 %v1149
        %v1216 = vunpack.c.l.b16 %v1150
        %v1217 = vunpack.c.l.b16 %v1151
        %v1218 = vunpack.c.l.b16 %v1152
        %v1219 = vunpack.c.l.b16 %v1153
        %v1220 = vunpack.c.l.b16 %v1154
        %v1221 = vpack.c.b16 %v1214, %v1213
        %v1222 = vpack.c.b16 %v1216, %v1215
        %v1223 = vpack.c.b16 %v1218, %v1217
        %v1224 = vpack.c.b16 %v1220, %v1219
        %v1226 = vsel %vm722, %v1221, 0
        %v1229 = vsel %vm722, %v1222, 0
        %v1232 = vsel %vm722, %v1223, 0
        %v1235 = vsel %vm722, %v1224, 0
        %1237 = vmatprep.subr.bf16.mxu0 0
        %1238 = vmatpush1.bf16.msra.mxu0 0
        %1239 = vmatprep.subr.bf16.mxu0 0
        %1240 = vmatpush1.bf16.msra.mxu0 0
        %1241 = vmatprep.subr.bf16.mxu0 0
        %1242 = vmatpush1.bf16.msra.mxu0 0
        %1243 = vmatprep.subr.bf16.mxu0 0
        %1244 = vmatpush1.bf16.msra.mxu0 0
        %1245 = vmatprep.subr.bf16.mxu0 0
        %1246 = vmatpush1.bf16.msra.mxu0 0
        %1247 = vmatprep.subr.bf16.mxu0 0
        %1248 = vmatpush1.bf16.msra.mxu0 0
        %1249 = vmatprep.subr.bf16.mxu0 0
        %1250 = vmatpush1.bf16.msra.mxu0 %v1164
        %1251 = vmatprep.subr.bf16.mxu0 0
        %1252 = vmatpush1.bf16.msra.mxu0 %v1163
        %1253 = vmatprep.subr.bf16.mxu0 0
        %1254 = vmatpush2.bf16.msra.mxu0 0
        %1255 = vmatprep.subr.bf16.mxu0 0
        %1256 = vmatpush2.bf16.msra.mxu0 0
        %1257 = vmatprep.subr.bf16.mxu0 0
        %1258 = vmatpush2.bf16.msra.mxu0 0
        %1259 = vmatprep.subr.bf16.mxu0 0
        %1260 = vmatpush2.bf16.msra.mxu0 0
        %1261 = vmatprep.subr.bf16.mxu0 0
        %1262 = vmatpush2.bf16.msra.mxu0 0
        %1263 = vmatprep.subr.bf16.mxu0 0
        %1264 = vmatpush2.bf16.msra.mxu0 0
        %1265 = vmatprep.subr.bf16.mxu0 0
        %1266 = vmatpush2.bf16.msra.mxu0 0
        %1267 = vmatprep.subr.bf16.mxu0 0
        %1268 = vmatpush2.bf16.msra.mxu0 0
        %1269 = vmatprep.mubr.bf16.mxu0 0
        %1270 = vmatmul.mubr.bf16.gmra.mxu0 %v1226
        %v1271 = vpop.f32.mrf.mxu0
        %v1272 = vadd.f32 %v1168, %v1271
        %v1273 = vpop.f32.mrf.mxu0
        %v1274 = vpop.f32.mrf.mxu0
        %v1275 = vadd.f32 %v1173, %v1274
        %v1276 = vpop.f32.mrf.mxu0
        %1277 = vmatprep.mubr.bf16.mxu0 0
        %1278 = vmatmul.mubr.bf16.gmra.mxu0 %v1229
        %v1279 = vpop.f32.mrf.mxu0
        %v1280 = vadd.f32 %v1178, %v1279
        %v1281 = vpop.f32.mrf.mxu0
        %v1282 = vpop.f32.mrf.mxu0
        %v1283 = vadd.f32 %v1183, %v1282
        %v1284 = vpop.f32.mrf.mxu0
        %1285 = vmatprep.mubr.bf16.mxu0 0
        %1286 = vmatmul.mubr.bf16.gmra.mxu0 %v1232
        %v1287 = vpop.f32.mrf.mxu0
        %v1288 = vadd.f32 %v1188, %v1287
        %v1289 = vpop.f32.mrf.mxu0
        %v1290 = vpop.f32.mrf.mxu0
        %v1291 = vadd.f32 %v1193, %v1290
        %v1292 = vpop.f32.mrf.mxu0
        %1293 = vmatprep.mubr.bf16.mxu0 0
        %1294 = vmatmul.mubr.bf16.gmra.mxu0 %v1235
        %v1295 = vpop.f32.mrf.mxu0
        %v1296 = vadd.f32 %v1198, %v1295
        %v1297 = vpop.f32.mrf.mxu0
        %v1298 = vpop.f32.mrf.mxu0
        %v1299 = vadd.f32 %v1203, %v1298
        %v1300 = vpop.f32.mrf.mxu0
        %1301 = vdwg.mxu0
        %v1302 = vmax.f32 %v1272, 0.0
        %v1303 = vmax.f32 %v1275, 0.0
        %v1304 = vmax.f32 %v1280, 0.0
        %v1305 = vmax.f32 %v1283, 0.0
        %v1306 = vmax.f32 %v1288, 0.0
        %v1307 = vmax.f32 %v1291, 0.0
        %v1308 = vmax.f32 %v1296, 0.0
        %v1309 = vmax.f32 %v1299, 0.0
        %v1310 = vadd.f32 %v1302, %v1306
        %v1311 = vadd.f32 %v1303, %v1307
        %v1312 = vadd.f32 %v1304, %v1308
        %v1313 = vadd.f32 %v1305, %v1309
        %v1314 = vld [vmem:[%s9] sm:$0xf]
        %v1315 = vld [vmem:[%s9 + $0x4] sm:$0xf]
        %v1316 = vld [vmem:[%s9 + $0x8] sm:$0xf]
        %v1317 = vld [vmem:[%s9 + $0xc] sm:$0xf]
        %v1318 = vld [vmem:[%s9 + $0x10] sm:$0xf]
        %v1319 = vld [vmem:[%s9 + $0x14] sm:$0xf]
        %v1320 = vld [vmem:[%s9 + $0x18] sm:$0xf]
        %v1321 = vld [vmem:[%s9 + $0x1c] sm:$0xf]
        %v1322 = vld [vmem:[%s10] sm:$0xff]
        %v1323 = vld [vmem:[%s10 + $0x8] sm:$0xff]
        %v1324 = vld [vmem:[%s10 + $0x10] sm:$0xff]
        %v1325 = vld [vmem:[%s10 + $0x18] sm:$0xff]
        %v1326 = vld [vmem:[%s10 + $0x20] sm:$0xff]
        %v1327 = vld [vmem:[%s10 + $0x28] sm:$0xff]
        %v1328 = vld [vmem:[%s10 + $0x30] sm:$0xff]
        %v1329 = vld [vmem:[%s10 + $0x38] sm:$0xff]
        %v1330 = vpack.c.bf16 %v1311, %v1310
        %v1331 = vpack.c.bf16 %v1313, %v1312
        %1333 = vset.pattern.permute.xlu0 0
        %1334 = vperm.xlu0 %1333, %v1322
        %v1335 = vpop.permute.xlu0 %1334
        %1338 = vset.pattern.permute.xlu0 0
        %1339 = vperm.xlu0 %1338, %v1323
        %v1340 = vpop.permute.xlu0 %1339
        %1343 = vset.pattern.permute.xlu0 0
        %1344 = vperm.xlu0 %1343, %v1324
        %v1345 = vpop.permute.xlu0 %1344
        %1348 = vset.pattern.permute.xlu0 0
        %1349 = vperm.xlu0 %1348, %v1325
        %v1350 = vpop.permute.xlu0 %1349
        %1353 = vset.pattern.permute.xlu0 0
        %1354 = vperm.xlu0 %1353, %v1326
        %v1355 = vpop.permute.xlu0 %1354
        %1358 = vset.pattern.permute.xlu0 0
        %1359 = vperm.xlu0 %1358, %v1327
        %v1360 = vpop.permute.xlu0 %1359
        %1363 = vset.pattern.permute.xlu0 0
        %1364 = vperm.xlu0 %1363, %v1328
        %v1365 = vpop.permute.xlu0 %1364
        %1368 = vset.pattern.permute.xlu0 0
        %1369 = vperm.xlu0 %1368, %v1329
        %v1370 = vpop.permute.xlu0 %1369
        %v1380 = vunpack.c.l.b16 %v1314
        %v1381 = vunpack.c.l.b16 %v1315
        %v1382 = vunpack.c.l.b16 %v1316
        %v1383 = vunpack.c.l.b16 %v1317
        %v1384 = vunpack.c.l.b16 %v1318
        %v1385 = vunpack.c.l.b16 %v1319
        %v1386 = vunpack.c.l.b16 %v1320
        %v1387 = vunpack.c.l.b16 %v1321
        %v1388 = vpack.c.b16 %v1381, %v1380
        %v1389 = vpack.c.b16 %v1383, %v1382
        %v1390 = vpack.c.b16 %v1385, %v1384
        %v1391 = vpack.c.b16 %v1387, %v1386
        %v1393 = vsel %vm722, %v1388, 0
        %v1396 = vsel %vm722, %v1389, 0
        %v1399 = vsel %vm722, %v1390, 0
        %v1402 = vsel %vm722, %v1391, 0
        %1404 = vmatprep.subr.bf16.mxu0 0
        %1405 = vmatpush1.bf16.msra.mxu0 0
        %1406 = vmatprep.subr.bf16.mxu0 0
        %1407 = vmatpush1.bf16.msra.mxu0 0
        %1408 = vmatprep.subr.bf16.mxu0 0
        %1409 = vmatpush1.bf16.msra.mxu0 0
        %1410 = vmatprep.subr.bf16.mxu0 0
        %1411 = vmatpush1.bf16.msra.mxu0 0
        %1412 = vmatprep.subr.bf16.mxu0 0
        %1413 = vmatpush1.bf16.msra.mxu0 0
        %1414 = vmatprep.subr.bf16.mxu0 0
        %1415 = vmatpush1.bf16.msra.mxu0 0
        %1416 = vmatprep.subr.bf16.mxu0 0
        %1417 = vmatpush1.bf16.msra.mxu0 %v1331
        %1418 = vmatprep.subr.bf16.mxu0 0
        %1419 = vmatpush1.bf16.msra.mxu0 %v1330
        %1420 = vmatprep.subr.bf16.mxu0 0
        %1421 = vmatpush2.bf16.msra.mxu0 0
        %1422 = vmatprep.subr.bf16.mxu0 0
        %1423 = vmatpush2.bf16.msra.mxu0 0
        %1424 = vmatprep.subr.bf16.mxu0 0
        %1425 = vmatpush2.bf16.msra.mxu0 0
        %1426 = vmatprep.subr.bf16.mxu0 0
        %1427 = vmatpush2.bf16.msra.mxu0 0
        %1428 = vmatprep.subr.bf16.mxu0 0
        %1429 = vmatpush2.bf16.msra.mxu0 0
        %1430 = vmatprep.subr.bf16.mxu0 0
        %1431 = vmatpush2.bf16.msra.mxu0 0
        %1432 = vmatprep.subr.bf16.mxu0 0
        %1433 = vmatpush2.bf16.msra.mxu0 0
        %1434 = vmatprep.subr.bf16.mxu0 0
        %1435 = vmatpush2.bf16.msra.mxu0 0
        %1436 = vmatprep.mubr.bf16.mxu0 0
        %1437 = vmatmul.mubr.bf16.gmra.mxu0 %v1393
        %v1438 = vpop.f32.mrf.mxu0
        %v1439 = vadd.f32 %v1335, %v1438
        %v1440 = vpop.f32.mrf.mxu0
        %v1441 = vpop.f32.mrf.mxu0
        %v1442 = vadd.f32 %v1340, %v1441
        %v1443 = vpop.f32.mrf.mxu0
        %1444 = vmatprep.mubr.bf16.mxu0 0
        %1445 = vmatmul.mubr.bf16.gmra.mxu0 %v1396
        %v1446 = vpop.f32.mrf.mxu0
        %v1447 = vadd.f32 %v1345, %v1446
        %v1448 = vpop.f32.mrf.mxu0
        %v1449 = vpop.f32.mrf.mxu0
        %v1450 = vadd.f32 %v1350, %v1449
        %v1451 = vpop.f32.mrf.mxu0
        %1452 = vmatprep.mubr.bf16.mxu0 0
        %1453 = vmatmul.mubr.bf16.gmra.mxu0 %v1399
        %v1454 = vpop.f32.mrf.mxu0
        %v1455 = vadd.f32 %v1355, %v1454
        %v1456 = vpop.f32.mrf.mxu0
        %v1457 = vpop.f32.mrf.mxu0
        %v1458 = vadd.f32 %v1360, %v1457
        %v1459 = vpop.f32.mrf.mxu0
        %1460 = vmatprep.mubr.bf16.mxu0 0
        %1461 = vmatmul.mubr.bf16.gmra.mxu0 %v1402
        %v1462 = vpop.f32.mrf.mxu0
        %v1463 = vadd.f32 %v1365, %v1462
        %v1464 = vpop.f32.mrf.mxu0
        %v1465 = vpop.f32.mrf.mxu0
        %v1466 = vadd.f32 %v1370, %v1465
        %v1467 = vpop.f32.mrf.mxu0
        %1468 = vdwg.mxu0
        %v1469 = vmax.f32 %v1439, 0.0
        %v1470 = vmax.f32 %v1442, 0.0
        %v1471 = vmax.f32 %v1447, 0.0
        %v1472 = vmax.f32 %v1450, 0.0
        %v1473 = vmax.f32 %v1455, 0.0
        %v1474 = vmax.f32 %v1458, 0.0
        %v1475 = vmax.f32 %v1463, 0.0
        %v1476 = vmax.f32 %v1466, 0.0
        %v1477 = vadd.f32 %v1469, %v1473
        %v1478 = vadd.f32 %v1470, %v1474
        %v1479 = vadd.f32 %v1471, %v1475
        %v1480 = vadd.f32 %v1472, %v1476
        %v1481 = vld [vmem:[%s11] sm:$0xf]
        %v1482 = vld [vmem:[%s11 + $0x4] sm:$0xf]
        %v1483 = vld [vmem:[%s11 + $0x8] sm:$0xf]
        %v1484 = vld [vmem:[%s11 + $0xc] sm:$0xf]
        %v1485 = vld [vmem:[%s11 + $0x10] sm:$0xf]
        %v1486 = vld [vmem:[%s11 + $0x14] sm:$0xf]
        %v1487 = vld [vmem:[%s11 + $0x18] sm:$0xf]
        %v1488 = vld [vmem:[%s11 + $0x1c] sm:$0xf]
        %v1489 = vld [vmem:[%s12] sm:$0xff]
        %v1490 = vld [vmem:[%s12 + $0x8] sm:$0xff]
        %v1491 = vld [vmem:[%s12 + $0x10] sm:$0xff]
        %v1492 = vld [vmem:[%s12 + $0x18] sm:$0xff]
        %v1493 = vld [vmem:[%s12 + $0x20] sm:$0xff]
        %v1494 = vld [vmem:[%s12 + $0x28] sm:$0xff]
        %v1495 = vld [vmem:[%s12 + $0x30] sm:$0xff]
        %v1496 = vld [vmem:[%s12 + $0x38] sm:$0xff]
        %1498 = vset.pattern.permute.xlu0 0
        %1499 = vperm.xlu0 %1498, %v1489
        %v1500 = vpop.permute.xlu0 %1499
        %1503 = vset.pattern.permute.xlu0 0
        %1504 = vperm.xlu0 %1503, %v1490
        %v1505 = vpop.permute.xlu0 %1504
        %1508 = vset.pattern.permute.xlu0 0
        %1509 = vperm.xlu0 %1508, %v1491
        %v1510 = vpop.permute.xlu0 %1509
        %1513 = vset.pattern.permute.xlu0 0
        %1514 = vperm.xlu0 %1513, %v1492
        %v1515 = vpop.permute.xlu0 %1514
        %1518 = vset.pattern.permute.xlu0 0
        %1519 = vperm.xlu0 %1518, %v1493
        %v1520 = vpop.permute.xlu0 %1519
        %1523 = vset.pattern.permute.xlu0 0
        %1524 = vperm.xlu0 %1523, %v1494
        %v1525 = vpop.permute.xlu0 %1524
        %1528 = vset.pattern.permute.xlu0 0
        %1529 = vperm.xlu0 %1528, %v1495
        %v1530 = vpop.permute.xlu0 %1529
        %1533 = vset.pattern.permute.xlu0 0
        %1534 = vperm.xlu0 %1533, %v1496
        %v1535 = vpop.permute.xlu0 %1534
        %v1545 = vunpack.c.l.b16 %v1481
        %v1546 = vunpack.c.l.b16 %v1482
        %v1547 = vunpack.c.l.b16 %v1483
        %v1548 = vunpack.c.l.b16 %v1484
        %v1549 = vunpack.c.l.b16 %v1485
        %v1550 = vunpack.c.l.b16 %v1486
        %v1551 = vunpack.c.l.b16 %v1487
        %v1552 = vunpack.c.l.b16 %v1488
        %v1553 = vpack.c.b16 %v1546, %v1545
        %v1554 = vpack.c.b16 %v1548, %v1547
        %v1555 = vpack.c.b16 %v1550, %v1549
        %v1556 = vpack.c.b16 %v1552, %v1551
        %v1558 = vsel %vm722, %v1553, 0
        %v1561 = vsel %vm722, %v1554, 0
        %v1564 = vsel %vm722, %v1555, 0
        %v1567 = vsel %vm722, %v1556, 0
        %1569 = vmatprep.subr.bf16.mxu0 0
        %1570 = vmatpush1.bf16.msra.mxu0 0
        %1571 = vmatprep.subr.bf16.mxu0 0
        %1572 = vmatpush1.bf16.msra.mxu0 0
        %1573 = vmatprep.subr.bf16.mxu0 0
        %1574 = vmatpush1.bf16.msra.mxu0 0
        %1575 = vmatprep.subr.bf16.mxu0 0
        %1576 = vmatpush1.bf16.msra.mxu0 0
        %1577 = vmatprep.subr.bf16.mxu0 0
        %1578 = vmatpush1.bf16.msra.mxu0 0
        %1579 = vmatprep.subr.bf16.mxu0 0
        %1580 = vmatpush1.bf16.msra.mxu0 0
        %1581 = vmatprep.subr.bf16.mxu0 0
        %1582 = vmatpush1.bf16.msra.mxu0 %v1164
        %1583 = vmatprep.subr.bf16.mxu0 0
        %1584 = vmatpush1.bf16.msra.mxu0 %v1163
        %1585 = vmatprep.subr.bf16.mxu0 0
        %1586 = vmatpush2.bf16.msra.mxu0 0
        %1587 = vmatprep.subr.bf16.mxu0 0
        %1588 = vmatpush2.bf16.msra.mxu0 0
        %1589 = vmatprep.subr.bf16.mxu0 0
        %1590 = vmatpush2.bf16.msra.mxu0 0
        %1591 = vmatprep.subr.bf16.mxu0 0
        %1592 = vmatpush2.bf16.msra.mxu0 0
        %1593 = vmatprep.subr.bf16.mxu0 0
        %1594 = vmatpush2.bf16.msra.mxu0 0
        %1595 = vmatprep.subr.bf16.mxu0 0
        %1596 = vmatpush2.bf16.msra.mxu0 0
        %1597 = vmatprep.subr.bf16.mxu0 0
        %1598 = vmatpush2.bf16.msra.mxu0 0
        %1599 = vmatprep.subr.bf16.mxu0 0
        %1600 = vmatpush2.bf16.msra.mxu0 0
        %1601 = vmatprep.mubr.bf16.mxu0 0
        %1602 = vmatmul.mubr.bf16.gmra.mxu0 %v1558
        %v1603 = vpop.f32.mrf.mxu0
        %v1604 = vadd.f32 %v1500, %v1603
        %v1605 = vpop.f32.mrf.mxu0
        %v1606 = vpop.f32.mrf.mxu0
        %v1607 = vadd.f32 %v1505, %v1606
        %v1608 = vpop.f32.mrf.mxu0
        %1609 = vmatprep.mubr.bf16.mxu0 0
        %1610 = vmatmul.mubr.bf16.gmra.mxu0 %v1561
        %v1611 = vpop.f32.mrf.mxu0
        %v1612 = vadd.f32 %v1510, %v1611
        %v1613 = vpop.f32.mrf.mxu0
        %v1614 = vpop.f32.mrf.mxu0
        %v1615 = vadd.f32 %v1515, %v1614
        %v1616 = vpop.f32.mrf.mxu0
        %1617 = vmatprep.mubr.bf16.mxu0 0
        %1618 = vmatmul.mubr.bf16.gmra.mxu0 %v1564
        %v1619 = vpop.f32.mrf.mxu0
        %v1620 = vadd.f32 %v1520, %v1619
        %v1621 = vpop.f32.mrf.mxu0
        %v1622 = vpop.f32.mrf.mxu0
        %v1623 = vadd.f32 %v1525, %v1622
        %v1624 = vpop.f32.mrf.mxu0
        %1625 = vmatprep.mubr.bf16.mxu0 0
        %1626 = vmatmul.mubr.bf16.gmra.mxu0 %v1567
        %v1627 = vpop.f32.mrf.mxu0
        %v1628 = vadd.f32 %v1530, %v1627
        %v1629 = vpop.f32.mrf.mxu0
        %v1630 = vpop.f32.mrf.mxu0
        %v1631 = vadd.f32 %v1535, %v1630
        %v1632 = vpop.f32.mrf.mxu0
        %1633 = vdwg.mxu0
        %v1634 = vmax.f32 %v1604, 0.0
        %v1635 = vmax.f32 %v1607, 0.0
        %v1636 = vmax.f32 %v1612, 0.0
        %v1637 = vmax.f32 %v1615, 0.0
        %v1638 = vmax.f32 %v1620, 0.0
        %v1639 = vmax.f32 %v1623, 0.0
        %v1640 = vmax.f32 %v1628, 0.0
        %v1641 = vmax.f32 %v1631, 0.0
        %v1642 = vadd.f32 %v1634, %v1638
        %v1643 = vadd.f32 %v1635, %v1639
        %v1644 = vadd.f32 %v1636, %v1640
        %v1645 = vadd.f32 %v1637, %v1641
        %v1646 = vld [vmem:[%s13] sm:$0xf]
        %v1647 = vld [vmem:[%s13 + $0x4] sm:$0xf]
        %v1648 = vld [vmem:[%s13 + $0x8] sm:$0xf]
        %v1649 = vld [vmem:[%s13 + $0xc] sm:$0xf]
        %v1650 = vld [vmem:[%s13 + $0x10] sm:$0xf]
        %v1651 = vld [vmem:[%s13 + $0x14] sm:$0xf]
        %v1652 = vld [vmem:[%s13 + $0x18] sm:$0xf]
        %v1653 = vld [vmem:[%s13 + $0x1c] sm:$0xf]
        %v1654 = vld [vmem:[%s14] sm:$0xff]
        %v1655 = vld [vmem:[%s14 + $0x8] sm:$0xff]
        %v1656 = vld [vmem:[%s14 + $0x10] sm:$0xff]
        %v1657 = vld [vmem:[%s14 + $0x18] sm:$0xff]
        %v1658 = vld [vmem:[%s14 + $0x20] sm:$0xff]
        %v1659 = vld [vmem:[%s14 + $0x28] sm:$0xff]
        %v1660 = vld [vmem:[%s14 + $0x30] sm:$0xff]
        %v1661 = vld [vmem:[%s14 + $0x38] sm:$0xff]
        %v1662 = vpack.c.bf16 %v1478, %v1477
        %v1663 = vpack.c.bf16 %v1480, %v1479
        %1665 = vset.pattern.permute.xlu0 0
        %1666 = vperm.xlu0 %1665, %v1654
        %v1667 = vpop.permute.xlu0 %1666
        %1670 = vset.pattern.permute.xlu0 0
        %1671 = vperm.xlu0 %1670, %v1655
        %v1672 = vpop.permute.xlu0 %1671
        %1675 = vset.pattern.permute.xlu0 0
        %1676 = vperm.xlu0 %1675, %v1656
        %v1677 = vpop.permute.xlu0 %1676
        %1680 = vset.pattern.permute.xlu0 0
        %1681 = vperm.xlu0 %1680, %v1657
        %v1682 = vpop.permute.xlu0 %1681
        %1685 = vset.pattern.permute.xlu0 0
        %1686 = vperm.xlu0 %1685, %v1658
        %v1687 = vpop.permute.xlu0 %1686
        %1690 = vset.pattern.permute.xlu0 0
        %1691 = vperm.xlu0 %1690, %v1659
        %v1692 = vpop.permute.xlu0 %1691
        %1695 = vset.pattern.permute.xlu0 0
        %1696 = vperm.xlu0 %1695, %v1660
        %v1697 = vpop.permute.xlu0 %1696
        %1700 = vset.pattern.permute.xlu0 0
        %1701 = vperm.xlu0 %1700, %v1661
        %v1702 = vpop.permute.xlu0 %1701
        %v1712 = vunpack.c.l.b16 %v1646
        %v1713 = vunpack.c.l.b16 %v1647
        %v1714 = vunpack.c.l.b16 %v1648
        %v1715 = vunpack.c.l.b16 %v1649
        %v1716 = vunpack.c.l.b16 %v1650
        %v1717 = vunpack.c.l.b16 %v1651
        %v1718 = vunpack.c.l.b16 %v1652
        %v1719 = vunpack.c.l.b16 %v1653
        %v1720 = vpack.c.b16 %v1713, %v1712
        %v1721 = vpack.c.b16 %v1715, %v1714
        %v1722 = vpack.c.b16 %v1717, %v1716
        %v1723 = vpack.c.b16 %v1719, %v1718
        %v1725 = vsel %vm722, %v1720, 0
        %v1728 = vsel %vm722, %v1721, 0
        %v1731 = vsel %vm722, %v1722, 0
        %v1734 = vsel %vm722, %v1723, 0
        %1736 = vmatprep.subr.bf16.mxu0 0
        %1737 = vmatpush1.bf16.msra.mxu0 0
        %1738 = vmatprep.subr.bf16.mxu0 0
        %1739 = vmatpush1.bf16.msra.mxu0 0
        %1740 = vmatprep.subr.bf16.mxu0 0
        %1741 = vmatpush1.bf16.msra.mxu0 0
        %1742 = vmatprep.subr.bf16.mxu0 0
        %1743 = vmatpush1.bf16.msra.mxu0 0
        %1744 = vmatprep.subr.bf16.mxu0 0
        %1745 = vmatpush1.bf16.msra.mxu0 0
        %1746 = vmatprep.subr.bf16.mxu0 0
        %1747 = vmatpush1.bf16.msra.mxu0 0
        %1748 = vmatprep.subr.bf16.mxu0 0
        %1749 = vmatpush1.bf16.msra.mxu0 %v1663
        %1750 = vmatprep.subr.bf16.mxu0 0
        %1751 = vmatpush1.bf16.msra.mxu0 %v1662
        %1752 = vmatprep.subr.bf16.mxu0 0
        %1753 = vmatpush2.bf16.msra.mxu0 0
        %1754 = vmatprep.subr.bf16.mxu0 0
        %1755 = vmatpush2.bf16.msra.mxu0 0
        %1756 = vmatprep.subr.bf16.mxu0 0
        %1757 = vmatpush2.bf16.msra.mxu0 0
        %1758 = vmatprep.subr.bf16.mxu0 0
        %1759 = vmatpush2.bf16.msra.mxu0 0
        %1760 = vmatprep.subr.bf16.mxu0 0
        %1761 = vmatpush2.bf16.msra.mxu0 0
        %1762 = vmatprep.subr.bf16.mxu0 0
        %1763 = vmatpush2.bf16.msra.mxu0 0
        %1764 = vmatprep.subr.bf16.mxu0 0
        %1765 = vmatpush2.bf16.msra.mxu0 0
        %1766 = vmatprep.subr.bf16.mxu0 0
        %1767 = vmatpush2.bf16.msra.mxu0 0
        %1768 = vmatprep.mubr.bf16.mxu0 0
        %1769 = vmatmul.mubr.bf16.gmra.mxu0 %v1725
        %v1770 = vpop.f32.mrf.mxu0
        %v1771 = vadd.f32 %v1667, %v1770
        %v1772 = vpop.f32.mrf.mxu0
        %v1773 = vpop.f32.mrf.mxu0
        %v1774 = vadd.f32 %v1672, %v1773
        %v1775 = vpop.f32.mrf.mxu0
        %1776 = vmatprep.mubr.bf16.mxu0 0
        %1777 = vmatmul.mubr.bf16.gmra.mxu0 %v1728
        %v1778 = vpop.f32.mrf.mxu0
        %v1779 = vadd.f32 %v1677, %v1778
        %v1780 = vpop.f32.mrf.mxu0
        %v1781 = vpop.f32.mrf.mxu0
        %v1782 = vadd.f32 %v1682, %v1781
        %v1783 = vpop.f32.mrf.mxu0
        %1784 = vmatprep.mubr.bf16.mxu0 0
        %1785 = vmatmul.mubr.bf16.gmra.mxu0 %v1731
        %v1786 = vpop.f32.mrf.mxu0
        %v1787 = vadd.f32 %v1687, %v1786
        %v1788 = vpop.f32.mrf.mxu0
        %v1789 = vpop.f32.mrf.mxu0
        %v1790 = vadd.f32 %v1692, %v1789
        %v1791 = vpop.f32.mrf.mxu0
        %1792 = vmatprep.mubr.bf16.mxu0 0
        %1793 = vmatmul.mubr.bf16.gmra.mxu0 %v1734
        %v1794 = vpop.f32.mrf.mxu0
        %v1795 = vadd.f32 %v1697, %v1794
        %v1796 = vpop.f32.mrf.mxu0
        %v1797 = vpop.f32.mrf.mxu0
        %v1798 = vadd.f32 %v1702, %v1797
        %v1799 = vpop.f32.mrf.mxu0
        %1800 = vdwg.mxu0
        %v1801 = vmax.f32 %v1771, 0.0
        %v1802 = vmax.f32 %v1774, 0.0
        %v1803 = vmax.f32 %v1779, 0.0
        %v1804 = vmax.f32 %v1782, 0.0
        %v1805 = vmax.f32 %v1787, 0.0
        %v1806 = vmax.f32 %v1790, 0.0
        %v1807 = vmax.f32 %v1795, 0.0
        %v1808 = vmax.f32 %v1798, 0.0
        %v1809 = vadd.f32 %v1801, %v1805
        %v1810 = vadd.f32 %v1802, %v1806
        %v1811 = vadd.f32 %v1803, %v1807
        %v1812 = vadd.f32 %v1804, %v1808
        %v1813 = vadd.f32 %v1642, %v1809
        %v1814 = vadd.f32 %v1643, %v1810
        %v1815 = vadd.f32 %v1644, %v1811
        %v1816 = vadd.f32 %v1645, %v1812
        %v1817 = vld [vmem:[%s15] sm:$0xf]
        %v1818 = vld [vmem:[%s15 + $0x4] sm:$0xf]
        %v1819 = vld [vmem:[%s15 + $0x8] sm:$0xf]
        %v1820 = vld [vmem:[%s15 + $0xc] sm:$0xf]
        %v1821 = vld [vmem:[%s15 + $0x10] sm:$0xf]
        %v1822 = vld [vmem:[%s15 + $0x14] sm:$0xf]
        %v1823 = vld [vmem:[%s15 + $0x18] sm:$0xf]
        %v1824 = vld [vmem:[%s15 + $0x1c] sm:$0xf]
        %v1825 = vld [vmem:[%s16] sm:$0xff]
        %v1826 = vld [vmem:[%s16 + $0x8] sm:$0xff]
        %v1827 = vld [vmem:[%s16 + $0x10] sm:$0xff]
        %v1828 = vld [vmem:[%s16 + $0x18] sm:$0xff]
        %v1829 = vld [vmem:[%s16 + $0x20] sm:$0xff]
        %v1830 = vld [vmem:[%s16 + $0x28] sm:$0xff]
        %v1831 = vld [vmem:[%s16 + $0x30] sm:$0xff]
        %v1832 = vld [vmem:[%s16 + $0x38] sm:$0xff]
        %v1833 = vpack.c.bf16 %v1814, %v1813
        %v1834 = vpack.c.bf16 %v1816, %v1815
        %1836 = vset.pattern.permute.xlu0 0
        %1837 = vperm.xlu0 %1836, %v1825
        %v1838 = vpop.permute.xlu0 %1837
        %1841 = vset.pattern.permute.xlu0 0
        %1842 = vperm.xlu0 %1841, %v1826
        %v1843 = vpop.permute.xlu0 %1842
        %1846 = vset.pattern.permute.xlu0 0
        %1847 = vperm.xlu0 %1846, %v1827
        %v1848 = vpop.permute.xlu0 %1847
        %1851 = vset.pattern.permute.xlu0 0
        %1852 = vperm.xlu0 %1851, %v1828
        %v1853 = vpop.permute.xlu0 %1852
        %1856 = vset.pattern.permute.xlu0 0
        %1857 = vperm.xlu0 %1856, %v1829
        %v1858 = vpop.permute.xlu0 %1857
        %1861 = vset.pattern.permute.xlu0 0
        %1862 = vperm.xlu0 %1861, %v1830
        %v1863 = vpop.permute.xlu0 %1862
        %1866 = vset.pattern.permute.xlu0 0
        %1867 = vperm.xlu0 %1866, %v1831
        %v1868 = vpop.permute.xlu0 %1867
        %1871 = vset.pattern.permute.xlu0 0
        %1872 = vperm.xlu0 %1871, %v1832
        %v1873 = vpop.permute.xlu0 %1872
        %v1883 = vunpack.c.l.b16 %v1817
        %v1884 = vunpack.c.l.b16 %v1818
        %v1885 = vunpack.c.l.b16 %v1819
        %v1886 = vunpack.c.l.b16 %v1820
        %v1887 = vunpack.c.l.b16 %v1821
        %v1888 = vunpack.c.l.b16 %v1822
        %v1889 = vunpack.c.l.b16 %v1823
        %v1890 = vunpack.c.l.b16 %v1824
        %v1891 = vpack.c.b16 %v1884, %v1883
        %v1892 = vpack.c.b16 %v1886, %v1885
        %v1893 = vpack.c.b16 %v1888, %v1887
        %v1894 = vpack.c.b16 %v1890, %v1889
        %v1896 = vsel %vm722, %v1891, 0
        %v1899 = vsel %vm722, %v1892, 0
        %v1902 = vsel %vm722, %v1893, 0
        %v1905 = vsel %vm722, %v1894, 0
        %1907 = vmatprep.subr.bf16.mxu0 0
        %1908 = vmatpush1.bf16.msra.mxu0 0
        %1909 = vmatprep.subr.bf16.mxu0 0
        %1910 = vmatpush1.bf16.msra.mxu0 0
        %1911 = vmatprep.subr.bf16.mxu0 0
        %1912 = vmatpush1.bf16.msra.mxu0 0
        %1913 = vmatprep.subr.bf16.mxu0 0
        %1914 = vmatpush1.bf16.msra.mxu0 0
        %1915 = vmatprep.subr.bf16.mxu0 0
        %1916 = vmatpush1.bf16.msra.mxu0 0
        %1917 = vmatprep.subr.bf16.mxu0 0
        %1918 = vmatpush1.bf16.msra.mxu0 0
        %1919 = vmatprep.subr.bf16.mxu0 0
        %1920 = vmatpush1.bf16.msra.mxu0 %v1834
        %1921 = vmatprep.subr.bf16.mxu0 0
        %1922 = vmatpush1.bf16.msra.mxu0 %v1833
        %1923 = vmatprep.subr.bf16.mxu0 0
        %1924 = vmatpush2.bf16.msra.mxu0 0
        %1925 = vmatprep.subr.bf16.mxu0 0
        %1926 = vmatpush2.bf16.msra.mxu0 0
        %1927 = vmatprep.subr.bf16.mxu0 0
        %1928 = vmatpush2.bf16.msra.mxu0 0
        %1929 = vmatprep.subr.bf16.mxu0 0
        %1930 = vmatpush2.bf16.msra.mxu0 0
        %1931 = vmatprep.subr.bf16.mxu0 0
        %1932 = vmatpush2.bf16.msra.mxu0 0
        %1933 = vmatprep.subr.bf16.mxu0 0
        %1934 = vmatpush2.bf16.msra.mxu0 0
        %1935 = vmatprep.subr.bf16.mxu0 0
        %1936 = vmatpush2.bf16.msra.mxu0 0
        %1937 = vmatprep.subr.bf16.mxu0 0
        %1938 = vmatpush2.bf16.msra.mxu0 0
        %1939 = vmatprep.mubr.bf16.mxu0 0
        %1940 = vmatmul.mubr.bf16.gmra.mxu0 %v1896
        %v1941 = vpop.f32.mrf.mxu0
        %v1942 = vadd.f32 %v1838, %v1941
        %v1943 = vpop.f32.mrf.mxu0
        %v1944 = vpop.f32.mrf.mxu0
        %v1945 = vadd.f32 %v1843, %v1944
        %v1946 = vpop.f32.mrf.mxu0
        %1947 = vmatprep.mubr.bf16.mxu0 0
        %1948 = vmatmul.mubr.bf16.gmra.mxu0 %v1899
        %v1949 = vpop.f32.mrf.mxu0
        %v1950 = vadd.f32 %v1848, %v1949
        %v1951 = vpop.f32.mrf.mxu0
        %v1952 = vpop.f32.mrf.mxu0
        %v1953 = vadd.f32 %v1853, %v1952
        %v1954 = vpop.f32.mrf.mxu0
        %1955 = vmatprep.mubr.bf16.mxu0 0
        %1956 = vmatmul.mubr.bf16.gmra.mxu0 %v1902
        %v1957 = vpop.f32.mrf.mxu0
        %v1958 = vadd.f32 %v1858, %v1957
        %v1959 = vpop.f32.mrf.mxu0
        %v1960 = vpop.f32.mrf.mxu0
        %v1961 = vadd.f32 %v1863, %v1960
        %v1962 = vpop.f32.mrf.mxu0
        %1963 = vmatprep.mubr.bf16.mxu0 0
        %1964 = vmatmul.mubr.bf16.gmra.mxu0 %v1905
        %v1965 = vpop.f32.mrf.mxu0
        %v1966 = vadd.f32 %v1868, %v1965
        %v1967 = vpop.f32.mrf.mxu0
        %v1968 = vpop.f32.mrf.mxu0
        %v1969 = vadd.f32 %v1873, %v1968
        %v1970 = vpop.f32.mrf.mxu0
        %1971 = vdwg.mxu0
        %v1972 = vmax.f32 %v1942, 0.0
        %v1973 = vmax.f32 %v1945, 0.0
        %v1974 = vmax.f32 %v1950, 0.0
        %v1975 = vmax.f32 %v1953, 0.0
        %v1976 = vmax.f32 %v1958, 0.0
        %v1977 = vmax.f32 %v1961, 0.0
        %v1978 = vmax.f32 %v1966, 0.0
        %v1979 = vmax.f32 %v1969, 0.0
        %v1980 = vadd.f32 %v1972, %v1976
        %v1981 = vadd.f32 %v1973, %v1977
        %v1982 = vadd.f32 %v1974, %v1978
        %v1983 = vadd.f32 %v1975, %v1979
        %s1984 = sld [smem:[#allocation2]]
        %v1985 = vstv %s1984
        %v1986 = vmul.f32 %v1985, %v1477
        %v1987 = vmul.f32 %v1985, %v1478
        %v1988 = vmul.f32 %v1985, %v1479
        %v1989 = vmul.f32 %v1985, %v1480
        %s1990 = sld [smem:[#allocation2 + $0x1]]
        %v1991 = vstv %s1990
        %v1992 = vmul.f32 %v1991, %v1980
        %v1993 = vmul.f32 %v1991, %v1981
        %v1994 = vmul.f32 %v1991, %v1982
        %v1995 = vmul.f32 %v1991, %v1983
        %v1996 = vadd.f32 %v1986, %v1992
        %v1997 = vadd.f32 %v1987, %v1993
        %v1998 = vadd.f32 %v1988, %v1994
        %v1999 = vadd.f32 %v1989, %v1995
        %v2000 = vld [vmem:[%s17] sm:$0xf]
        %v2001 = vpack.c.bf16 %v1997, %v1996
        %v2002 = vpack.c.bf16 %v1999, %v1998
        %v2003 = vld [vmem:[%s18] sm:$0xff]
        %2005 = vset.pattern.permute.xlu0 0
        %2006 = vperm.xlu0 %2005, %v2003
        %v2007 = vpop.permute.xlu0 %2006
        %v2010 = vsel %vm722, %v2000, 0
        %2012 = vmatprep.subr.bf16.mxu0 0
        %2013 = vmatpush1.bf16.msra.mxu0 0
        %2014 = vmatprep.subr.bf16.mxu0 0
        %2015 = vmatpush1.bf16.msra.mxu0 0
        %2016 = vmatprep.subr.bf16.mxu0 0
        %2017 = vmatpush1.bf16.msra.mxu0 0
        %2018 = vmatprep.subr.bf16.mxu0 0
        %2019 = vmatpush1.bf16.msra.mxu0 0
        %2020 = vmatprep.subr.bf16.mxu0 0
        %2021 = vmatpush1.bf16.msra.mxu0 0
        %2022 = vmatprep.subr.bf16.mxu0 0
        %2023 = vmatpush1.bf16.msra.mxu0 0
        %2024 = vmatprep.subr.bf16.mxu0 0
        %2025 = vmatpush1.bf16.msra.mxu0 %v2002
        %2026 = vmatprep.subr.bf16.mxu0 0
        %2027 = vmatpush1.bf16.msra.mxu0 %v2001
        %2028 = vmatprep.subr.bf16.mxu0 0
        %2029 = vmatpush2.bf16.msra.mxu0 0
        %2030 = vmatprep.subr.bf16.mxu0 0
        %2031 = vmatpush2.bf16.msra.mxu0 0
        %2032 = vmatprep.subr.bf16.mxu0 0
        %2033 = vmatpush2.bf16.msra.mxu0 0
        %2034 = vmatprep.subr.bf16.mxu0 0
        %2035 = vmatpush2.bf16.msra.mxu0 0
        %2036 = vmatprep.subr.bf16.mxu0 0
        %2037 = vmatpush2.bf16.msra.mxu0 0
        %2038 = vmatprep.subr.bf16.mxu0 0
        %2039 = vmatpush2.bf16.msra.mxu0 0
        %2040 = vmatprep.subr.bf16.mxu0 0
        %2041 = vmatpush2.bf16.msra.mxu0 0
        %2042 = vmatprep.subr.bf16.mxu0 0
        %2043 = vmatpush2.bf16.msra.mxu0 0
        %2044 = vmatprep.mubr.bf16.mxu0 0
        %2045 = vmatmul.mubr.bf16.gmra.mxu0 %v2010
        %v2046 = vpop.f32.mrf.mxu0
        %v2047 = vadd.f32 %v2007, %v2046
        %v2048 = vpop.f32.mrf.mxu0
        %v2049 = vpop.f32.mrf.mxu0
        %v2050 = vpop.f32.mrf.mxu0
        %2051 = vdwg.mxu0
        %vm2052 = vcmask 523264
        %2053 = vst.msk [vmem:[%s676] sm:$0xff] %vm2052, %v2047
        %p2054 = scmp.lt.s32.totalorder %s35, 1
        %s2055 = scalar_select %p2054, %s35, 1
        %p2056 = scmp.lt.s32.totalorder %s36, 0
        %s2057 = scalar_select %p2056, %s36, 0
        %s2058 = sadd.s32 %s2057, %s2055
        %s2059 = smul.addr %s2058, 8
        %s2060 = scalar_lea.vmem %s19, %s2059
        // Predicated region
        $region101: #{_lambda_.1} parent=95 // pred_check
          %p2061 = pneg %p476
        $region102: #{_lambda_.1} parent=95 // pred_check_branch
          %2063 = sbr.rel (%p2061) target = $region104
        $region103: #{_lambda_.1} parent=95 // pred_region
          _
        $region104: #{_lambda_.1} parent=95 // pred_fallthru
          _
      $region96: #{_lambda_.1} parent=5 // pred_fallthru
        _
      %p2064 = scmp.le.s32.totalorder 2, %s26
      // Predicated region
      $region105: #{_lambda_.1} parent=5 // pred_check
        %p2065 = pneg %p2064
      $region106: #{_lambda_.1} parent=5 // pred_check_branch
        %2067 = sbr.rel (%p2065) target = $region108
      $region107: #{_lambda_.1} parent=5 // pred_region
        %s2068 = ssub.s32 %s26, 2
        // Predicated region
        $region109: #{_lambda_.1} parent=107 // pred_check
          %p2069 = pneg %p482
        $region110: #{_lambda_.1} parent=107 // pred_check_branch
          %2071 = sbr.rel (%p2069) target = $region112
        $region111: #{_lambda_.1} parent=107 // pred_region
          %p2072 = scmp.lt.s32.totalorder %s37, 1
          %s2073 = scalar_select %p2072, %s37, 1
          %p2074 = scmp.lt.s32.totalorder %s38, 0
          %s2075 = scalar_select %p2074, %s38, 0
          %s2076 = sadd.s32 %s2075, %s2073
          %s2077 = smul.addr %s2076, 8
          %s2078 = scalar_lea.vmem %s19, %s2077
        $region112: #{_lambda_.1} parent=107 // pred_fallthru
          _
      $region108: #{_lambda_.1} parent=5 // pred_fallthru
        _
    $region6: #{_lambda_.1} parent=1 // loop_footer
      %s30 = sadd.s32 1, %s26
    $region7: #{_lambda_.1} parent=1 // loop_footer_branch
      %25 = sbr.rel target = $region3
    $region8: #{_lambda_.1} parent=1 // loop_exit
      _
    %2079 = vsyncpa [#allocation3], 1
    %s2080 = scalar_lea.sflag [#allocation3], 1
    %2081 = vsyncpa %s2080, 1

</llo_original>
